<compile_context>
chip_gen: v6e
topology: v6e:2x2x1
jax: 0.10.0
libtpu: 0.0.40
codegen_flags: <defaults>
</compile_context>

<pallas_src>
import math
import functools

import jax
import jax.numpy as jnp
from jax import lax
from jax.experimental import pallas as pl
from jax.experimental.pallas import tpu as pltpu


def _round_up(x, m):
    return (x + m - 1) // m * m


# ---------------------------------------------------------------------------
# Relative positional encoding table (pure function of T, d_model).
# Row j (j = 0 .. 2T-2) encodes relative position r = T-1-j, reproducing
# RelPositionalEncoding.forward exactly.
# ---------------------------------------------------------------------------
def rel_positional_encoding(T, d_model):
    assert d_model % 2 == 0, "d_model must be even (sin/cos interleave)"
    rel = jnp.arange(T - 1, -T, -1, dtype=jnp.float32)                   # (2T-1,)
    div = jnp.exp(jnp.arange(0, d_model, 2, dtype=jnp.float32)
                  * (-math.log(10000.0) / d_model))                       # (d/2,)
    ang = rel[:, None] * div[None, :]
    pe = jnp.zeros((2 * T - 1, d_model), jnp.float32)
    pe = pe.at[:, 0::2].set(jnp.sin(ang))
    pe = pe.at[:, 1::2].set(jnp.cos(ang))
    return pe


def _dot_nt(a, b):
    """a: (m, k), b: (n, k) -> (m, n); contracts last dims, f32 accumulation."""
    return lax.dot_general(a, b, (((1,), (1,)), ((), ())),
                           preferred_element_type=jnp.float32)


# ---------------------------------------------------------------------------
# Pallas kernel: one batch element per grid step.
# LayerNorm -> q/k/v projections -> per-head (content + shifted positional)
# scores -> softmax -> attn @ v -> output projection.
# ---------------------------------------------------------------------------
def mhsa_kernel(x_ref, p_ref, gamma_ref, beta_ref,
                wq_ref, bq_ref, wk_ref, bk_ref, wv_ref, bv_ref,
                ub_ref, vb_ref, wo_ref, bo_ref,
                o_ref, ctx_ref, *, num_heads, d_head, eps):
    x = x_ref[0]                         # (T, D) f32
    T = x.shape[0]
    W = p_ref.shape[1]                   # padded rel-position width (mult of 128)

    # ---- LayerNorm (f32, VPU) ----
    mean = jnp.mean(x, axis=-1, keepdims=True)
    var = jnp.mean(jnp.square(x - mean), axis=-1, keepdims=True)
    xn = (x - mean) * lax.rsqrt(var + eps) * gamma_ref[...] + beta_ref[...]
    xn_b = xn.astype(jnp.bfloat16)

    # ---- projections: bf16 MXU operands, f32 accumulation ----
    q = jnp.dot(xn_b, wq_ref[...], preferred_element_type=jnp.float32) + bq_ref[...]
    k = (jnp.dot(xn_b, wk_ref[...], preferred_element_type=jnp.float32)
         + bk_ref[...]).astype(jnp.bfloat16)
    v = (jnp.dot(xn_b, wv_ref[...], preferred_element_type=jnp.float32)
         + bv_ref[...]).astype(jnp.bfloat16)

    # fold 1/sqrt(d_head) into the query side (cheaper than scaling (T,T) scores)
    inv_sqrt = 1.0 / math.sqrt(d_head)
    qu = ((q + ub_ref[...]) * inv_sqrt).astype(jnp.bfloat16)     # (T, D)
    qv = ((q + vb_ref[...]) * inv_sqrt).astype(jnp.bfloat16)     # (T, D)

    for h in range(num_heads):                                   # static head loop
        s = h * d_head
        qu_h = qu[:, s:s + d_head]
        qv_h = qv[:, s:s + d_head]
        k_h = k[:, s:s + d_head]
        v_h = v[:, s:s + d_head]
        p_h = p_ref[h]                                           # (W, d_head) bf16

        content = _dot_nt(qu_h, k_h)                             # (T, T) f32
        pos_raw = _dot_nt(qv_h, p_h)                             # (T, W) f32

        # relative shift: shifted[i, j] = pos_raw[i, T-1+j-i].
        # Single XLU lane-rotate with per-sublane stride, then a static slice.
        # Zero-padded columns of pos_raw can never land inside [:, :T].
        rolled = pltpu.roll(pos_raw, W - (T - 1), 1, stride=1, stride_axis=0)
        score = content + rolled[:, :T]

        # softmax (f32; exp + approximate reciprocal use the EUP slot)
        score = score - jnp.max(score, axis=-1, keepdims=True)
        e = jnp.exp(score)
        attn = e * pl.reciprocal(jnp.sum(e, axis=-1, keepdims=True), approx=True)

        ctx_ref[:, s:s + d_head] = jnp.dot(attn.astype(jnp.bfloat16), v_h,
                                           preferred_element_type=jnp.float32)

    # TODO(synk): optional attention mask (masked_fill -1e9) not wired in; the
    #             module's default forward uses mask=None.
    out = jnp.dot(ctx_ref[...].astype(jnp.bfloat16), wo_ref[...],
                  preferred_element_type=jnp.float32) + bo_ref[...]
    o_ref[0] = out.astype(o_ref.dtype)


# ---------------------------------------------------------------------------
# Wrapper: hoists the batch-invariant positional projection, reshapes params,
# builds BlockSpecs, and calls pallas_call.
# ---------------------------------------------------------------------------
def multi_headed_self_attention(x, gamma, beta, wq, bq, wk, bk, wv, bv, wp,
                                u_bias, v_bias, wo, bo, *, num_heads):
    B, T, D = x.shape
    assert D % num_heads == 0
    d_head = D // num_heads
    P = 2 * T - 1
    W = _round_up(P, 128)                       # pad rel-pos axis to lane multiple

    # batch-invariant positional projection, hoisted out of the kernel
    pe = rel_positional_encoding(T, D)                                    # (P, D)
    p = pe @ wp                                                           # (P, D)
    p = jnp.concatenate([p, jnp.zeros((W - P, D), p.dtype)], axis=0)      # (W, D)
    p = p.reshape(W, num_heads, d_head).transpose(1, 0, 2)                # (H, W, dh)
    p = p.astype(jnp.bfloat16)

    bf16 = jnp.bfloat16
    row = lambda a: a.reshape(1, D).astype(jnp.float32)
    args = (x, p, row(gamma), row(beta),
            wq.astype(bf16), row(bq), wk.astype(bf16), row(bk),
            wv.astype(bf16), row(bv),
            u_bias.reshape(1, D).astype(jnp.float32),
            v_bias.reshape(1, D).astype(jnp.float32),
            wo.astype(bf16), row(bo))

    def full(shp):
        return pl.BlockSpec(shp, lambda b, _n=len(shp): (0,) * _n)

    in_specs = [
        pl.BlockSpec((1, T, D), lambda b: (b, 0, 0)),   # x
        full((num_heads, W, d_head)),                   # p (per-head, padded)
        full((1, D)), full((1, D)),                     # gamma, beta
        full((D, D)), full((1, D)),                     # wq, bq
        full((D, D)), full((1, D)),                     # wk, bk
        full((D, D)), full((1, D)),                     # wv, bv
        full((1, D)), full((1, D)),                     # u_bias, v_bias (flat rows)
        full((D, D)), full((1, D)),                     # wo, bo
    ]

    kernel = functools.partial(mhsa_kernel, num_heads=num_heads,
                               d_head=d_head, eps=1e-5)

    # TODO(synk): for large T, tile the query axis (flash-style online softmax)
    #             and add it as an extra "parallel" grid axis (v7x megacore);
    #             raise vmem_limit_bytes via CompilerParams for large D.
    return pl.pallas_call(
        kernel,
        out_shape=jax.ShapeDtypeStruct((B, T, D), jnp.float32),
        grid=(B,),
        in_specs=in_specs,
        out_specs=pl.BlockSpec((1, T, D), lambda b: (b, 0, 0)),
        scratch_shapes=[pltpu.VMEM((T, D), jnp.float32)],
        compiler_params=pltpu.CompilerParams(dimension_semantics=("parallel",)),
    )(*args)


# ---------------------------------------------------------------------------
# Pure-JAX f32 reference (mirrors the PyTorch forward, incl. pad/reshape shift).
# ---------------------------------------------------------------------------
def _rel_shift_ref(pos_score):
    b, h, t1, t2 = pos_score.shape
    zeros = jnp.zeros((b, h, t1, 1), pos_score.dtype)
    padded = jnp.concatenate([zeros, pos_score], axis=-1)
    padded = padded.reshape(b, h, t2 + 1, t1)
    return padded[:, :, 1:].reshape(b, h, t1, t2)[:, :, :, : t2 // 2 + 1]


def reference_forward(x, gamma, beta, wq, bq, wk, bk, wv, bv, wp,
                      u_bias, v_bias, wo, bo, *, num_heads):
    B, T, D = x.shape
    dh = D // num_heads
    pos = jnp.broadcast_to(rel_positional_encoding(T, D)[None], (B, 2 * T - 1, D))

    mean = x.mean(-1, keepdims=True)
    var = ((x - mean) ** 2).mean(-1, keepdims=True)
    xn = (x - mean) / jnp.sqrt(var + 1e-5) * gamma + beta

    q = (xn @ wq + bq).reshape(B, T, num_heads, dh)
    k = (xn @ wk + bk).reshape(B, T, num_heads, dh).transpose(0, 2, 1, 3)
    v = (xn @ wv + bv).reshape(B, T, num_heads, dh).transpose(0, 2, 1, 3)
    p = (pos @ wp).reshape(B, 2 * T - 1, num_heads, dh)

    content = jnp.einsum('bihd,bhjd->bhij', q + u_bias, k)
    pos_score = _rel_shift_ref(jnp.einsum('bihd,bjhd->bhij', q + v_bias, p))
    score = (content + pos_score) / math.sqrt(dh)
    attn = jax.nn.softmax(score, axis=-1)
    ctx = jnp.einsum('bhij,bhjd->bihd', attn, v).reshape(B, T, D)
    return ctx @ wo + bo


# ---------------------------------------------------------------------------
def _xavier(key, shape, fan_in, fan_out):
    limit = math.sqrt(6.0 / (fan_in + fan_out))
    return jax.random.uniform(key, shape, jnp.float32, -limit, limit)


if __name__ == "__main__":
    B, T, D, H = 2, 8, 32, 4
    dh = D // H

    key = jax.random.PRNGKey(0)
    ks = jax.random.split(key, 14)
    x = jax.random.normal(ks[0], (B, T, D), jnp.float32)

    # parameters (non-zero biases / affine to exercise every code path)
    gamma = 1.0 + 0.1 * jax.random.normal(ks[8], (D,), jnp.float32)
    beta = 0.1 * jax.random.normal(ks[9], (D,), jnp.float32)
    wq = _xavier(ks[1], (D, D), D, D)            # stored (in, out)
    wk = _xavier(ks[2], (D, D), D, D)
    wv = _xavier(ks[3], (D, D), D, D)
    wp = _xavier(ks[4], (D, D), D, D)
    wo = _xavier(ks[5], (D, D), D, D)
    bq = 0.1 * jax.random.normal(ks[10], (D,), jnp.float32)
    bk = 0.1 * jax.random.normal(ks[11], (D,), jnp.float32)
    bv = 0.1 * jax.random.normal(ks[12], (D,), jnp.float32)
    bo = 0.1 * jax.random.normal(ks[13], (D,), jnp.float32)
    u_bias = _xavier(ks[6], (H, dh), dh, H)
    v_bias = _xavier(ks[7], (H, dh), dh, H)

    out = multi_headed_self_attention(x, gamma, beta, wq, bq, wk, bk, wv, bv,
                                      wp, u_bias, v_bias, wo, bo, num_heads=H)
    out = jax.block_until_ready(out)

    ref = reference_forward(x, gamma, beta, wq, bq, wk, bk, wv, bv,
                            wp, u_bias, v_bias, wo, bo, num_heads=H)
    ref = jax.block_until_ready(ref)

    err = float(jnp.max(jnp.abs(out - ref)))
    scale = float(jnp.max(jnp.abs(ref)))
    # bf16-MXU tolerance: structural bugs (e.g. wrong relative shift) produce
    # errors >> this bound; bf16 rounding noise sits well below it.
    if not err <= 2e-2 * (1.0 + scale):
        raise AssertionError(
            f"Pallas kernel mismatch vs f32 reference: max abs err = {err}, "
            f"ref scale = {scale}")

    print("KERNEL_OK")
</pallas_src>

<mosaic_0001>
module attributes {stable_mosaic.version = 11 : i64} {
  func.func @mhsa_kernel(%arg0: i32, %arg1: memref<1x8x32xf32, #tpu.memory_space<vmem>>, %arg2: memref<4x128x8xbf16, #tpu.memory_space<vmem>>, %arg3: memref<1x32xf32, #tpu.memory_space<vmem>>, %arg4: memref<1x32xf32, #tpu.memory_space<vmem>>, %arg5: memref<32x32xbf16, #tpu.memory_space<vmem>>, %arg6: memref<1x32xf32, #tpu.memory_space<vmem>>, %arg7: memref<32x32xbf16, #tpu.memory_space<vmem>>, %arg8: memref<1x32xf32, #tpu.memory_space<vmem>>, %arg9: memref<32x32xbf16, #tpu.memory_space<vmem>>, %arg10: memref<1x32xf32, #tpu.memory_space<vmem>>, %arg11: memref<1x32xf32, #tpu.memory_space<vmem>>, %arg12: memref<1x32xf32, #tpu.memory_space<vmem>>, %arg13: memref<32x32xbf16, #tpu.memory_space<vmem>>, %arg14: memref<1x32xf32, #tpu.memory_space<vmem>>, %arg15: memref<1x8x32xf32, #tpu.memory_space<vmem>>, %arg16: memref<8x32xf32, #tpu.memory_space<vmem>>) attributes {dimension_semantics = [#tpu.dimension_semantics<parallel>], iteration_bounds = array<i64: 2>, scalar_prefetch = 0 : i64, scratch_operands = 1 : i64, tpu.core_type = #tpu.core_type<tc>, window_params = [{transform_indices = @transform_0, window_bounds = array<i64: 1, 8, 32>}, {pipeline_mode = #tpu.pipeline_mode<synchronous>, transform_indices = @transform_1, window_bounds = array<i64: 4, 128, 8>}, {pipeline_mode = #tpu.pipeline_mode<synchronous>, transform_indices = @transform_2, window_bounds = array<i64: 1, 32>}, {pipeline_mode = #tpu.pipeline_mode<synchronous>, transform_indices = @transform_3, window_bounds = array<i64: 1, 32>}, {pipeline_mode = #tpu.pipeline_mode<synchronous>, transform_indices = @transform_4, window_bounds = array<i64: 32, 32>}, {pipeline_mode = #tpu.pipeline_mode<synchronous>, transform_indices = @transform_5, window_bounds = array<i64: 1, 32>}, {pipeline_mode = #tpu.pipeline_mode<synchronous>, transform_indices = @transform_6, window_bounds = array<i64: 32, 32>}, {pipeline_mode = #tpu.pipeline_mode<synchronous>, transform_indices = @transform_7, window_bounds = array<i64: 1, 32>}, {pipeline_mode = #tpu.pipeline_mode<synchronous>, transform_indices = @transform_8, window_bounds = array<i64: 32, 32>}, {pipeline_mode = #tpu.pipeline_mode<synchronous>, transform_indices = @transform_9, window_bounds = array<i64: 1, 32>}, {pipeline_mode = #tpu.pipeline_mode<synchronous>, transform_indices = @transform_10, window_bounds = array<i64: 1, 32>}, {pipeline_mode = #tpu.pipeline_mode<synchronous>, transform_indices = @transform_11, window_bounds = array<i64: 1, 32>}, {pipeline_mode = #tpu.pipeline_mode<synchronous>, transform_indices = @transform_12, window_bounds = array<i64: 32, 32>}, {pipeline_mode = #tpu.pipeline_mode<synchronous>, transform_indices = @transform_13, window_bounds = array<i64: 1, 32>}, {transform_indices = @transform_14, window_bounds = array<i64: 1, 8, 32>}]} {
    %c0 = arith.constant 0 : index
    %c0_0 = arith.constant 0 : index
    %c0_1 = arith.constant 0 : index
    %0 = vector.load %arg1[%c0, %c0_0, %c0_1] : memref<1x8x32xf32, #tpu.memory_space<vmem>>, vector<1x8x32xf32>
    %1 = vector.shape_cast %0 : vector<1x8x32xf32> to vector<8x32xf32>
    %cst = arith.constant dense<0.000000e+00> : vector<8xf32>
    %2 = vector.multi_reduction <add>, %1, %cst [1] : vector<8x32xf32> to vector<8xf32>
    %3 = vector.shape_cast %2 : vector<8xf32> to vector<8x1xf32>
    %cst_2 = arith.constant 3.200000e+01 : f32
    %4 = vector.broadcast %cst_2 : f32 to vector<8x1xf32>
    %5 = arith.divf %3, %4 : vector<8x1xf32>
    %6 = vector.broadcast %5 : vector<8x1xf32> to vector<8x32xf32>
    %7 = arith.subf %1, %6 : vector<8x32xf32>
    %8 = arith.mulf %7, %7 : vector<8x32xf32>
    %cst_3 = arith.constant dense<0.000000e+00> : vector<8xf32>
    %9 = vector.multi_reduction <add>, %8, %cst_3 [1] : vector<8x32xf32> to vector<8xf32>
    %10 = vector.shape_cast %9 : vector<8xf32> to vector<8x1xf32>
    %cst_4 = arith.constant 3.200000e+01 : f32
    %11 = vector.broadcast %cst_4 : f32 to vector<8x1xf32>
    %12 = arith.divf %10, %11 : vector<8x1xf32>
    %13 = vector.broadcast %5 : vector<8x1xf32> to vector<8x32xf32>
    %14 = arith.subf %1, %13 : vector<8x32xf32>
    %cst_5 = arith.constant 9.99999974E-6 : f32
    %15 = vector.broadcast %cst_5 : f32 to vector<8x1xf32>
    %16 = arith.addf %12, %15 : vector<8x1xf32>
    %17 = math.rsqrt %16 : vector<8x1xf32>
    %18 = vector.broadcast %17 : vector<8x1xf32> to vector<8x32xf32>
    %19 = arith.mulf %14, %18 : vector<8x32xf32>
    %c0_6 = arith.constant 0 : index
    %c0_7 = arith.constant 0 : index
    %20 = vector.load %arg3[%c0_6, %c0_7] : memref<1x32xf32, #tpu.memory_space<vmem>>, vector<1x32xf32>
    %21 = vector.broadcast %20 : vector<1x32xf32> to vector<8x32xf32>
    %22 = arith.mulf %19, %21 : vector<8x32xf32>
    %c0_8 = arith.constant 0 : index
    %c0_9 = arith.constant 0 : index
    %23 = vector.load %arg4[%c0_8, %c0_9] : memref<1x32xf32, #tpu.memory_space<vmem>>, vector<1x32xf32>
    %24 = vector.broadcast %23 : vector<1x32xf32> to vector<8x32xf32>
    %25 = arith.addf %22, %24 : vector<8x32xf32>
    %26 = arith.truncf %25 : vector<8x32xf32> to vector<8x32xbf16>
    %c0_10 = arith.constant 0 : index
    %c0_11 = arith.constant 0 : index
    %27 = vector.load %arg5[%c0_10, %c0_11] : memref<32x32xbf16, #tpu.memory_space<vmem>>, vector<32x32xbf16>
    %cst_12 = arith.constant dense<0.000000e+00> : vector<8x32xf32>
    %28 = tpu.matmul %26, %27, %cst_12 {dimension_numbers = #tpu.dot_dimension_numbers<[1], [0], [0], [1], [0, 0, 1, 1], [], []>} : vector<8x32xbf16>, vector<32x32xbf16>, vector<8x32xf32> -> vector<8x32xf32>
    %c0_13 = arith.constant 0 : index
    %c0_14 = arith.constant 0 : index
    %29 = vector.load %arg6[%c0_13, %c0_14] : memref<1x32xf32, #tpu.memory_space<vmem>>, vector<1x32xf32>
    %30 = vector.broadcast %29 : vector<1x32xf32> to vector<8x32xf32>
    %31 = arith.addf %28, %30 : vector<8x32xf32>
    %c0_15 = arith.constant 0 : index
    %c0_16 = arith.constant 0 : index
    %32 = vector.load %arg7[%c0_15, %c0_16] : memref<32x32xbf16, #tpu.memory_space<vmem>>, vector<32x32xbf16>
    %cst_17 = arith.constant dense<0.000000e+00> : vector<8x32xf32>
    %33 = tpu.matmul %26, %32, %cst_17 {dimension_numbers = #tpu.dot_dimension_numbers<[1], [0], [0], [1], [0, 0, 1, 1], [], []>} : vector<8x32xbf16>, vector<32x32xbf16>, vector<8x32xf32> -> vector<8x32xf32>
    %c0_18 = arith.constant 0 : index
    %c0_19 = arith.constant 0 : index
    %34 = vector.load %arg8[%c0_18, %c0_19] : memref<1x32xf32, #tpu.memory_space<vmem>>, vector<1x32xf32>
    %35 = vector.broadcast %34 : vector<1x32xf32> to vector<8x32xf32>
    %36 = arith.addf %33, %35 : vector<8x32xf32>
    %37 = arith.truncf %36 : vector<8x32xf32> to vector<8x32xbf16>
    %c0_20 = arith.constant 0 : index
    %c0_21 = arith.constant 0 : index
    %38 = vector.load %arg9[%c0_20, %c0_21] : memref<32x32xbf16, #tpu.memory_space<vmem>>, vector<32x32xbf16>
    %cst_22 = arith.constant dense<0.000000e+00> : vector<8x32xf32>
    %39 = tpu.matmul %26, %38, %cst_22 {dimension_numbers = #tpu.dot_dimension_numbers<[1], [0], [0], [1], [0, 0, 1, 1], [], []>} : vector<8x32xbf16>, vector<32x32xbf16>, vector<8x32xf32> -> vector<8x32xf32>
    %c0_23 = arith.constant 0 : index
    %c0_24 = arith.constant 0 : index
    %40 = vector.load %arg10[%c0_23, %c0_24] : memref<1x32xf32, #tpu.memory_space<vmem>>, vector<1x32xf32>
    %41 = vector.broadcast %40 : vector<1x32xf32> to vector<8x32xf32>
    %42 = arith.addf %39, %41 : vector<8x32xf32>
    %43 = arith.truncf %42 : vector<8x32xf32> to vector<8x32xbf16>
    %c0_25 = arith.constant 0 : index
    %c0_26 = arith.constant 0 : index
    %44 = vector.load %arg11[%c0_25, %c0_26] : memref<1x32xf32, #tpu.memory_space<vmem>>, vector<1x32xf32>
    %45 = vector.broadcast %44 : vector<1x32xf32> to vector<8x32xf32>
    %46 = arith.addf %31, %45 : vector<8x32xf32>
    %cst_27 = arith.constant 0.353553385 : f32
    %47 = vector.broadcast %cst_27 : f32 to vector<8x32xf32>
    %48 = arith.mulf %46, %47 : vector<8x32xf32>
    %49 = arith.truncf %48 : vector<8x32xf32> to vector<8x32xbf16>
    %c0_28 = arith.constant 0 : index
    %c0_29 = arith.constant 0 : index
    %50 = vector.load %arg12[%c0_28, %c0_29] : memref<1x32xf32, #tpu.memory_space<vmem>>, vector<1x32xf32>
    %51 = vector.broadcast %50 : vector<1x32xf32> to vector<8x32xf32>
    %52 = arith.addf %31, %51 : vector<8x32xf32>
    %cst_30 = arith.constant 0.353553385 : f32
    %53 = vector.broadcast %cst_30 : f32 to vector<8x32xf32>
    %54 = arith.mulf %52, %53 : vector<8x32xf32>
    %55 = arith.truncf %54 : vector<8x32xf32> to vector<8x32xbf16>
    %56 = vector.extract_strided_slice %49 {offsets = [0, 0], sizes = [8, 8], strides = [1, 1]} : vector<8x32xbf16> to vector<8x8xbf16>
    %57 = vector.extract_strided_slice %55 {offsets = [0, 0], sizes = [8, 8], strides = [1, 1]} : vector<8x32xbf16> to vector<8x8xbf16>
    %58 = vector.extract_strided_slice %37 {offsets = [0, 0], sizes = [8, 8], strides = [1, 1]} : vector<8x32xbf16> to vector<8x8xbf16>
    %59 = vector.extract_strided_slice %43 {offsets = [0, 0], sizes = [8, 8], strides = [1, 1]} : vector<8x32xbf16> to vector<8x8xbf16>
    %c0_31 = arith.constant 0 : index
    %c0_32 = arith.constant 0 : index
    %c0_33 = arith.constant 0 : index
    %60 = vector.load %arg2[%c0_31, %c0_32, %c0_33] : memref<4x128x8xbf16, #tpu.memory_space<vmem>>, vector<1x128x8xbf16>
    %61 = vector.shape_cast %60 : vector<1x128x8xbf16> to vector<128x8xbf16>
    %cst_34 = arith.constant dense<0.000000e+00> : vector<8x8xf32>
    %62 = tpu.matmul %56, %58, %cst_34 {dimension_numbers = #tpu.dot_dimension_numbers<[1], [1], [0], [0], [0, 0, 1, 0], [], []>} : vector<8x8xbf16>, vector<8x8xbf16>, vector<8x8xf32> -> vector<8x8xf32>
    %cst_35 = arith.constant dense<0.000000e+00> : vector<8x128xf32>
    %63 = tpu.matmul %57, %61, %cst_35 {dimension_numbers = #tpu.dot_dimension_numbers<[1], [1], [0], [0], [0, 0, 1, 0], [], []>} : vector<8x8xbf16>, vector<128x8xbf16>, vector<8x128xf32> -> vector<8x128xf32>
    %c121_i32 = arith.constant 121 : i32
    %64 = tpu.dynamic_rotate %63 by %c121_i32 dim 1 {stride = 1 : si32, stride_dimension = 0 : si32} : vector<8x128xf32>, i32 -> vector<8x128xf32>
    %65 = vector.extract_strided_slice %64 {offsets = [0, 0], sizes = [8, 8], strides = [1, 1]} : vector<8x128xf32> to vector<8x8xf32>
    %66 = arith.addf %62, %65 : vector<8x8xf32>
    %cst_36 = arith.constant dense<0xFF800000> : vector<8xf32>
    %67 = vector.multi_reduction <maximumf>, %66, %cst_36 [1] : vector<8x8xf32> to vector<8xf32>
    %68 = vector.shape_cast %67 : vector<8xf32> to vector<8x1xf32>
    %69 = vector.broadcast %68 : vector<8x1xf32> to vector<8x8xf32>
    %70 = arith.subf %66, %69 : vector<8x8xf32>
    %71 = math.exp %70 : vector<8x8xf32>
    %cst_37 = arith.constant dense<0.000000e+00> : vector<8xf32>
    %72 = vector.multi_reduction <add>, %71, %cst_37 [1] : vector<8x8xf32> to vector<8xf32>
    %73 = vector.shape_cast %72 : vector<8xf32> to vector<8x1xf32>
    %74 = tpu.reciprocal %73 {approx = true} : vector<8x1xf32> -> vector<8x1xf32>
    %75 = vector.broadcast %74 : vector<8x1xf32> to vector<8x8xf32>
    %76 = arith.mulf %71, %75 : vector<8x8xf32>
    %77 = arith.truncf %76 : vector<8x8xf32> to vector<8x8xbf16>
    %cst_38 = arith.constant dense<0.000000e+00> : vector<8x8xf32>
    %78 = tpu.matmul %77, %59, %cst_38 {dimension_numbers = #tpu.dot_dimension_numbers<[1], [0], [0], [1], [0, 0, 1, 1], [], []>} : vector<8x8xbf16>, vector<8x8xbf16>, vector<8x8xf32> -> vector<8x8xf32>
    %c0_39 = arith.constant 0 : index
    %c0_40 = arith.constant 0 : index
    %79 = vector.load %arg16[%c0_39, %c0_40] : memref<8x32xf32, #tpu.memory_space<vmem>>, vector<8x8xf32>
    tpu.vector_store %arg16[%c0_39, %c0_40], %78 {strides = array<i32>} : memref<8x32xf32, #tpu.memory_space<vmem>>, vector<8x8xf32>,
    %80 = vector.extract_strided_slice %49 {offsets = [0, 8], sizes = [8, 8], strides = [1, 1]} : vector<8x32xbf16> to vector<8x8xbf16>
    %81 = vector.extract_strided_slice %55 {offsets = [0, 8], sizes = [8, 8], strides = [1, 1]} : vector<8x32xbf16> to vector<8x8xbf16>
    %82 = vector.extract_strided_slice %37 {offsets = [0, 8], sizes = [8, 8], strides = [1, 1]} : vector<8x32xbf16> to vector<8x8xbf16>
    %83 = vector.extract_strided_slice %43 {offsets = [0, 8], sizes = [8, 8], strides = [1, 1]} : vector<8x32xbf16> to vector<8x8xbf16>
    %c1 = arith.constant 1 : index
    %c0_41 = arith.constant 0 : index
    %c0_42 = arith.constant 0 : index
    %84 = vector.load %arg2[%c1, %c0_41, %c0_42] : memref<4x128x8xbf16, #tpu.memory_space<vmem>>, vector<1x128x8xbf16>
    %85 = vector.shape_cast %84 : vector<1x128x8xbf16> to vector<128x8xbf16>
    %cst_43 = arith.constant dense<0.000000e+00> : vector<8x8xf32>
    %86 = tpu.matmul %80, %82, %cst_43 {dimension_numbers = #tpu.dot_dimension_numbers<[1], [1], [0], [0], [0, 0, 1, 0], [], []>} : vector<8x8xbf16>, vector<8x8xbf16>, vector<8x8xf32> -> vector<8x8xf32>
    %cst_44 = arith.constant dense<0.000000e+00> : vector<8x128xf32>
    %87 = tpu.matmul %81, %85, %cst_44 {dimension_numbers = #tpu.dot_dimension_numbers<[1], [1], [0], [0], [0, 0, 1, 0], [], []>} : vector<8x8xbf16>, vector<128x8xbf16>, vector<8x128xf32> -> vector<8x128xf32>
    %c121_i32_45 = arith.constant 121 : i32
    %88 = tpu.dynamic_rotate %87 by %c121_i32_45 dim 1 {stride = 1 : si32, stride_dimension = 0 : si32} : vector<8x128xf32>, i32 -> vector<8x128xf32>
    %89 = vector.extract_strided_slice %88 {offsets = [0, 0], sizes = [8, 8], strides = [1, 1]} : vector<8x128xf32> to vector<8x8xf32>
    %90 = arith.addf %86, %89 : vector<8x8xf32>
    %cst_46 = arith.constant dense<0xFF800000> : vector<8xf32>
    %91 = vector.multi_reduction <maximumf>, %90, %cst_46 [1] : vector<8x8xf32> to vector<8xf32>
    %92 = vector.shape_cast %91 : vector<8xf32> to vector<8x1xf32>
    %93 = vector.broadcast %92 : vector<8x1xf32> to vector<8x8xf32>
    %94 = arith.subf %90, %93 : vector<8x8xf32>
    %95 = math.exp %94 : vector<8x8xf32>
    %cst_47 = arith.constant dense<0.000000e+00> : vector<8xf32>
    %96 = vector.multi_reduction <add>, %95, %cst_47 [1] : vector<8x8xf32> to vector<8xf32>
    %97 = vector.shape_cast %96 : vector<8xf32> to vector<8x1xf32>
    %98 = tpu.reciprocal %97 {approx = true} : vector<8x1xf32> -> vector<8x1xf32>
    %99 = vector.broadcast %98 : vector<8x1xf32> to vector<8x8xf32>
    %100 = arith.mulf %95, %99 : vector<8x8xf32>
    %101 = arith.truncf %100 : vector<8x8xf32> to vector<8x8xbf16>
    %cst_48 = arith.constant dense<0.000000e+00> : vector<8x8xf32>
    %102 = tpu.matmul %101, %83, %cst_48 {dimension_numbers = #tpu.dot_dimension_numbers<[1], [0], [0], [1], [0, 0, 1, 1], [], []>} : vector<8x8xbf16>, vector<8x8xbf16>, vector<8x8xf32> -> vector<8x8xf32>
    %c0_49 = arith.constant 0 : index
    %c8 = arith.constant 8 : index
    %103 = vector.load %arg16[%c0_49, %c8] : memref<8x32xf32, #tpu.memory_space<vmem>>, vector<8x8xf32>
    tpu.vector_store %arg16[%c0_49, %c8], %102 {strides = array<i32>} : memref<8x32xf32, #tpu.memory_space<vmem>>, vector<8x8xf32>,
    %104 = vector.extract_strided_slice %49 {offsets = [0, 16], sizes = [8, 8], strides = [1, 1]} : vector<8x32xbf16> to vector<8x8xbf16>
    %105 = vector.extract_strided_slice %55 {offsets = [0, 16], sizes = [8, 8], strides = [1, 1]} : vector<8x32xbf16> to vector<8x8xbf16>
    %106 = vector.extract_strided_slice %37 {offsets = [0, 16], sizes = [8, 8], strides = [1, 1]} : vector<8x32xbf16> to vector<8x8xbf16>
    %107 = vector.extract_strided_slice %43 {offsets = [0, 16], sizes = [8, 8], strides = [1, 1]} : vector<8x32xbf16> to vector<8x8xbf16>
    %c2 = arith.constant 2 : index
    %c0_50 = arith.constant 0 : index
    %c0_51 = arith.constant 0 : index
    %108 = vector.load %arg2[%c2, %c0_50, %c0_51] : memref<4x128x8xbf16, #tpu.memory_space<vmem>>, vector<1x128x8xbf16>
    %109 = vector.shape_cast %108 : vector<1x128x8xbf16> to vector<128x8xbf16>
    %cst_52 = arith.constant dense<0.000000e+00> : vector<8x8xf32>
    %110 = tpu.matmul %104, %106, %cst_52 {dimension_numbers = #tpu.dot_dimension_numbers<[1], [1], [0], [0], [0, 0, 1, 0], [], []>} : vector<8x8xbf16>, vector<8x8xbf16>, vector<8x8xf32> -> vector<8x8xf32>
    %cst_53 = arith.constant dense<0.000000e+00> : vector<8x128xf32>
    %111 = tpu.matmul %105, %109, %cst_53 {dimension_numbers = #tpu.dot_dimension_numbers<[1], [1], [0], [0], [0, 0, 1, 0], [], []>} : vector<8x8xbf16>, vector<128x8xbf16>, vector<8x128xf32> -> vector<8x128xf32>
    %c121_i32_54 = arith.constant 121 : i32
    %112 = tpu.dynamic_rotate %111 by %c121_i32_54 dim 1 {stride = 1 : si32, stride_dimension = 0 : si32} : vector<8x128xf32>, i32 -> vector<8x128xf32>
    %113 = vector.extract_strided_slice %112 {offsets = [0, 0], sizes = [8, 8], strides = [1, 1]} : vector<8x128xf32> to vector<8x8xf32>
    %114 = arith.addf %110, %113 : vector<8x8xf32>
    %cst_55 = arith.constant dense<0xFF800000> : vector<8xf32>
    %115 = vector.multi_reduction <maximumf>, %114, %cst_55 [1] : vector<8x8xf32> to vector<8xf32>
    %116 = vector.shape_cast %115 : vector<8xf32> to vector<8x1xf32>
    %117 = vector.broadcast %116 : vector<8x1xf32> to vector<8x8xf32>
    %118 = arith.subf %114, %117 : vector<8x8xf32>
    %119 = math.exp %118 : vector<8x8xf32>
    %cst_56 = arith.constant dense<0.000000e+00> : vector<8xf32>
    %120 = vector.multi_reduction <add>, %119, %cst_56 [1] : vector<8x8xf32> to vector<8xf32>
    %121 = vector.shape_cast %120 : vector<8xf32> to vector<8x1xf32>
    %122 = tpu.reciprocal %121 {approx = true} : vector<8x1xf32> -> vector<8x1xf32>
    %123 = vector.broadcast %122 : vector<8x1xf32> to vector<8x8xf32>
    %124 = arith.mulf %119, %123 : vector<8x8xf32>
    %125 = arith.truncf %124 : vector<8x8xf32> to vector<8x8xbf16>
    %cst_57 = arith.constant dense<0.000000e+00> : vector<8x8xf32>
    %126 = tpu.matmul %125, %107, %cst_57 {dimension_numbers = #tpu.dot_dimension_numbers<[1], [0], [0], [1], [0, 0, 1, 1], [], []>} : vector<8x8xbf16>, vector<8x8xbf16>, vector<8x8xf32> -> vector<8x8xf32>
    %c0_58 = arith.constant 0 : index
    %c16 = arith.constant 16 : index
    %127 = vector.load %arg16[%c0_58, %c16] : memref<8x32xf32, #tpu.memory_space<vmem>>, vector<8x8xf32>
    tpu.vector_store %arg16[%c0_58, %c16], %126 {strides = array<i32>} : memref<8x32xf32, #tpu.memory_space<vmem>>, vector<8x8xf32>,
    %128 = vector.extract_strided_slice %49 {offsets = [0, 24], sizes = [8, 8], strides = [1, 1]} : vector<8x32xbf16> to vector<8x8xbf16>
    %129 = vector.extract_strided_slice %55 {offsets = [0, 24], sizes = [8, 8], strides = [1, 1]} : vector<8x32xbf16> to vector<8x8xbf16>
    %130 = vector.extract_strided_slice %37 {offsets = [0, 24], sizes = [8, 8], strides = [1, 1]} : vector<8x32xbf16> to vector<8x8xbf16>
    %131 = vector.extract_strided_slice %43 {offsets = [0, 24], sizes = [8, 8], strides = [1, 1]} : vector<8x32xbf16> to vector<8x8xbf16>
    %c3 = arith.constant 3 : index
    %c0_59 = arith.constant 0 : index
    %c0_60 = arith.constant 0 : index
    %132 = vector.load %arg2[%c3, %c0_59, %c0_60] : memref<4x128x8xbf16, #tpu.memory_space<vmem>>, vector<1x128x8xbf16>
    %133 = vector.shape_cast %132 : vector<1x128x8xbf16> to vector<128x8xbf16>
    %cst_61 = arith.constant dense<0.000000e+00> : vector<8x8xf32>
    %134 = tpu.matmul %128, %130, %cst_61 {dimension_numbers = #tpu.dot_dimension_numbers<[1], [1], [0], [0], [0, 0, 1, 0], [], []>} : vector<8x8xbf16>, vector<8x8xbf16>, vector<8x8xf32> -> vector<8x8xf32>
    %cst_62 = arith.constant dense<0.000000e+00> : vector<8x128xf32>
    %135 = tpu.matmul %129, %133, %cst_62 {dimension_numbers = #tpu.dot_dimension_numbers<[1], [1], [0], [0], [0, 0, 1, 0], [], []>} : vector<8x8xbf16>, vector<128x8xbf16>, vector<8x128xf32> -> vector<8x128xf32>
    %c121_i32_63 = arith.constant 121 : i32
    %136 = tpu.dynamic_rotate %135 by %c121_i32_63 dim 1 {stride = 1 : si32, stride_dimension = 0 : si32} : vector<8x128xf32>, i32 -> vector<8x128xf32>
    %137 = vector.extract_strided_slice %136 {offsets = [0, 0], sizes = [8, 8], strides = [1, 1]} : vector<8x128xf32> to vector<8x8xf32>
    %138 = arith.addf %134, %137 : vector<8x8xf32>
    %cst_64 = arith.constant dense<0xFF800000> : vector<8xf32>
    %139 = vector.multi_reduction <maximumf>, %138, %cst_64 [1] : vector<8x8xf32> to vector<8xf32>
    %140 = vector.shape_cast %139 : vector<8xf32> to vector<8x1xf32>
    %141 = vector.broadcast %140 : vector<8x1xf32> to vector<8x8xf32>
    %142 = arith.subf %138, %141 : vector<8x8xf32>
    %143 = math.exp %142 : vector<8x8xf32>
    %cst_65 = arith.constant dense<0.000000e+00> : vector<8xf32>
    %144 = vector.multi_reduction <add>, %143, %cst_65 [1] : vector<8x8xf32> to vector<8xf32>
    %145 = vector.shape_cast %144 : vector<8xf32> to vector<8x1xf32>
    %146 = tpu.reciprocal %145 {approx = true} : vector<8x1xf32> -> vector<8x1xf32>
    %147 = vector.broadcast %146 : vector<8x1xf32> to vector<8x8xf32>
    %148 = arith.mulf %143, %147 : vector<8x8xf32>
    %149 = arith.truncf %148 : vector<8x8xf32> to vector<8x8xbf16>
    %cst_66 = arith.constant dense<0.000000e+00> : vector<8x8xf32>
    %150 = tpu.matmul %149, %131, %cst_66 {dimension_numbers = #tpu.dot_dimension_numbers<[1], [0], [0], [1], [0, 0, 1, 1], [], []>} : vector<8x8xbf16>, vector<8x8xbf16>, vector<8x8xf32> -> vector<8x8xf32>
    %c0_67 = arith.constant 0 : index
    %c24 = arith.constant 24 : index
    %151 = vector.load %arg16[%c0_67, %c24] : memref<8x32xf32, #tpu.memory_space<vmem>>, vector<8x8xf32>
    tpu.vector_store %arg16[%c0_67, %c24], %150 {strides = array<i32>} : memref<8x32xf32, #tpu.memory_space<vmem>>, vector<8x8xf32>,
    %c0_68 = arith.constant 0 : index
    %c0_69 = arith.constant 0 : index
    %152 = vector.load %arg16[%c0_68, %c0_69] : memref<8x32xf32, #tpu.memory_space<vmem>>, vector<8x32xf32>
    %153 = arith.truncf %152 : vector<8x32xf32> to vector<8x32xbf16>
    %c0_70 = arith.constant 0 : index
    %c0_71 = arith.constant 0 : index
    %154 = vector.load %arg13[%c0_70, %c0_71] : memref<32x32xbf16, #tpu.memory_space<vmem>>, vector<32x32xbf16>
    %cst_72 = arith.constant dense<0.000000e+00> : vector<8x32xf32>
    %155 = tpu.matmul %153, %154, %cst_72 {dimension_numbers = #tpu.dot_dimension_numbers<[1], [0], [0], [1], [0, 0, 1, 1], [], []>} : vector<8x32xbf16>, vector<32x32xbf16>, vector<8x32xf32> -> vector<8x32xf32>
    %c0_73 = arith.constant 0 : index
    %c0_74 = arith.constant 0 : index
    %156 = vector.load %arg14[%c0_73, %c0_74] : memref<1x32xf32, #tpu.memory_space<vmem>>, vector<1x32xf32>
    %157 = vector.broadcast %156 : vector<1x32xf32> to vector<8x32xf32>
    %158 = arith.addf %155, %157 : vector<8x32xf32>
    %c0_75 = arith.constant 0 : index
    %c0_76 = arith.constant 0 : index
    %c0_77 = arith.constant 0 : index
    %159 = vector.load %arg15[%c0_75, %c0_76, %c0_77] : memref<1x8x32xf32, #tpu.memory_space<vmem>>, vector<1x8x32xf32>
    %160 = vector.shape_cast %159 : vector<1x8x32xf32> to vector<8x32xf32>
    %161 = vector.shape_cast %158 : vector<8x32xf32> to vector<1x8x32xf32>
    tpu.vector_store %arg15[%c0_75, %c0_76, %c0_77], %161 {strides = array<i32>} : memref<1x8x32xf32, #tpu.memory_space<vmem>>, vector<1x8x32xf32>,
    return
  }
  func.func @transform_0(%arg0: i32) -> (i32, i32, i32) {
    %c0_i32 = arith.constant 0 : i32
    %c0_i32_0 = arith.constant 0 : i32
    %c0_i32_1 = arith.constant 0 : i32
    return %arg0, %c0_i32, %c0_i32_0 : i32, i32, i32
  }
  func.func @transform_1(%arg0: i32) -> (i32, i32, i32) {
    %c0_i32 = arith.constant 0 : i32
    %c0_i32_0 = arith.constant 0 : i32
    %c0_i32_1 = arith.constant 0 : i32
    %c0_i32_2 = arith.constant 0 : i32
    return %c0_i32, %c0_i32_0, %c0_i32_1 : i32, i32, i32
  }
  func.func @transform_2(%arg0: i32) -> (i32, i32) {
    %c0_i32 = arith.constant 0 : i32
    %c0_i32_0 = arith.constant 0 : i32
    %c0_i32_1 = arith.constant 0 : i32
    return %c0_i32, %c0_i32_0 : i32, i32
  }
  func.func @transform_3(%arg0: i32) -> (i32, i32) {
    %c0_i32 = arith.constant 0 : i32
    %c0_i32_0 = arith.constant 0 : i32
    %c0_i32_1 = arith.constant 0 : i32
    return %c0_i32, %c0_i32_0 : i32, i32
  }
  func.func @transform_4(%arg0: i32) -> (i32, i32) {
    %c0_i32 = arith.constant 0 : i32
    %c0_i32_0 = arith.constant 0 : i32
    %c0_i32_1 = arith.constant 0 : i32
    return %c0_i32, %c0_i32_0 : i32, i32
  }
  func.func @transform_5(%arg0: i32) -> (i32, i32) {
    %c0_i32 = arith.constant 0 : i32
    %c0_i32_0 = arith.constant 0 : i32
    %c0_i32_1 = arith.constant 0 : i32
    return %c0_i32, %c0_i32_0 : i32, i32
  }
  func.func @transform_6(%arg0: i32) -> (i32, i32) {
    %c0_i32 = arith.constant 0 : i32
    %c0_i32_0 = arith.constant 0 : i32
    %c0_i32_1 = arith.constant 0 : i32
    return %c0_i32, %c0_i32_0 : i32, i32
  }
  func.func @transform_7(%arg0: i32) -> (i32, i32) {
    %c0_i32 = arith.constant 0 : i32
    %c0_i32_0 = arith.constant 0 : i32
    %c0_i32_1 = arith.constant 0 : i32
    return %c0_i32, %c0_i32_0 : i32, i32
  }
  func.func @transform_8(%arg0: i32) -> (i32, i32) {
    %c0_i32 = arith.constant 0 : i32
    %c0_i32_0 = arith.constant 0 : i32
    %c0_i32_1 = arith.constant 0 : i32
    return %c0_i32, %c0_i32_0 : i32, i32
  }
  func.func @transform_9(%arg0: i32) -> (i32, i32) {
    %c0_i32 = arith.constant 0 : i32
    %c0_i32_0 = arith.constant 0 : i32
    %c0_i32_1 = arith.constant 0 : i32
    return %c0_i32, %c0_i32_0 : i32, i32
  }
  func.func @transform_10(%arg0: i32) -> (i32, i32) {
    %c0_i32 = arith.constant 0 : i32
    %c0_i32_0 = arith.constant 0 : i32
    %c0_i32_1 = arith.constant 0 : i32
    return %c0_i32, %c0_i32_0 : i32, i32
  }
  func.func @transform_11(%arg0: i32) -> (i32, i32) {
    %c0_i32 = arith.constant 0 : i32
    %c0_i32_0 = arith.constant 0 : i32
    %c0_i32_1 = arith.constant 0 : i32
    return %c0_i32, %c0_i32_0 : i32, i32
  }
  func.func @transform_12(%arg0: i32) -> (i32, i32) {
    %c0_i32 = arith.constant 0 : i32
    %c0_i32_0 = arith.constant 0 : i32
    %c0_i32_1 = arith.constant 0 : i32
    return %c0_i32, %c0_i32_0 : i32, i32
  }
  func.func @transform_13(%arg0: i32) -> (i32, i32) {
    %c0_i32 = arith.constant 0 : i32
    %c0_i32_0 = arith.constant 0 : i32
    %c0_i32_1 = arith.constant 0 : i32
    return %c0_i32, %c0_i32_0 : i32, i32
  }
  func.func @transform_14(%arg0: i32) -> (i32, i32, i32) {
    %c0_i32 = arith.constant 0 : i32
    %c0_i32_0 = arith.constant 0 : i32
    %c0_i32_1 = arith.constant 0 : i32
    return %arg0, %c0_i32, %c0_i32_0 : i32, i32, i32
  }
}

</mosaic_0001>

<llo_original>
// kernel: tpu_custom_call.1
$region0: #{tpu_custom_call.1}
  #allocation0 [shape = 'u32[]', space=smem, size = 0x4, offset = 0x4, fixed_abs, tag = 'smem constant byte address 0x4 - core index']
  #allocation1 [shape = 'u32[144,128]{1,0:T(1,128)}', space=vmem, size = 0x12000, scoped, tag = 'internal scratch']
  #allocation2 [shape = 'f32[8,32]{1,0:T(8,128)}', space=vmem, size = 0x1000, scoped, tag = 'scratch operand']
  %s0 = inlined_call_operand.vmem [shape: f32[2,8,32], index: 0, kind: input, shape index: {}]
  %s1 = inlined_call_operand.vmem [shape: bf16[4,128,8], index: 1, kind: input, shape index: {}]
  %s2 = inlined_call_operand.vmem [shape: f32[1,32], index: 2, kind: input, shape index: {}]
  %s3 = inlined_call_operand.vmem [shape: f32[1,32], index: 3, kind: input, shape index: {}]
  %s4 = inlined_call_operand.vmem [shape: bf16[32,32], index: 4, kind: input, shape index: {}]
  %s5 = inlined_call_operand.vmem [shape: f32[1,32], index: 5, kind: input, shape index: {}]
  %s6 = inlined_call_operand.vmem [shape: bf16[32,32], index: 6, kind: input, shape index: {}]
  %s7 = inlined_call_operand.vmem [shape: f32[1,32], index: 7, kind: input, shape index: {}]
  %s8 = inlined_call_operand.vmem [shape: bf16[32,32], index: 8, kind: input, shape index: {}]
  %s9 = inlined_call_operand.vmem [shape: f32[1,32], index: 9, kind: input, shape index: {}]
  %s10 = inlined_call_operand.vmem [shape: f32[1,32], index: 10, kind: input, shape index: {}]
  %s11 = inlined_call_operand.vmem [shape: f32[1,32], index: 11, kind: input, shape index: {}]
  %s12 = inlined_call_operand.vmem [shape: bf16[32,32], index: 12, kind: input, shape index: {}]
  %s13 = inlined_call_operand.vmem [shape: f32[1,32], index: 13, kind: input, shape index: {}]
  %s14 = inlined_call_operand.hbm [shape: f32[2,8,32], index: 14, kind: output, shape index: {}]
  %s15 = sld [smem:[#allocation0]]
  $region89: #{tpu_custom_call.1} parent=0
    _
  %s17 = ssub.s32 1, %s15
  %s18 = scalar_select 0, %s17, %s15
  $region1: #{tpu_custom_call.1} parent=0
    #allocation3 [shape = 'u8[8192]{0}', space=vmem, size = 0x2000, scoped, tag = 'output window, operand 0']
    #allocation4 [shape = 's32[2]{0}', space=sflag, size = 0x8, scoped, tag = 'scoped memory for tpu_custom_call.1']
    %19 = vsyncpa [#allocation4], 0
    %s20 = scalar_lea.sflag [#allocation4], 1
    %21 = vsyncpa %s20, 0
    loop: start=0, step=1, limit=4
    $region2: #{tpu_custom_call.1} parent=1 // loop_pre_header
      _
    $region3: #{tpu_custom_call.1} parent=1 // loop_header
      %s23 = sphi 0, %s27
      %p24 = scmp.ge.s32.totalorder %s23, 4
      %s33 = sphi 0, %s35
      %s36 = sphi 0, %s33
      %s37 = sphi 0, %s36
      %s53 = sphi 0, %s37
      %s57 = sphi 0, %s57
      %s59 = sphi 0, %s57
      %s60 = sphi 0, %s59
      %s74 = sphi 0, %s60
      %s78 = sphi 0, %s78
      %s80 = sphi 0, %s78
      %s81 = sphi 0, %s80
      %s95 = sphi 0, %s81
      %s99 = sphi 0, %s99
      %s101 = sphi 0, %s99
      %s102 = sphi 0, %s101
      %s116 = sphi 0, %s102
      %s120 = sphi 0, %s120
      %s122 = sphi 0, %s120
      %s123 = sphi 0, %s122
      %s137 = sphi 0, %s123
      %s141 = sphi 0, %s141
      %s143 = sphi 0, %s141
      %s144 = sphi 0, %s143
      %s158 = sphi 0, %s144
      %s162 = sphi 0, %s162
      %s164 = sphi 0, %s162
      %s165 = sphi 0, %s164
      %s179 = sphi 0, %s165
      %s183 = sphi 0, %s183
      %s185 = sphi 0, %s183
      %s186 = sphi 0, %s185
      %s200 = sphi 0, %s186
      %s204 = sphi 0, %s204
      %s206 = sphi 0, %s204
      %s207 = sphi 0, %s206
      %s221 = sphi 0, %s207
      %s225 = sphi 0, %s225
      %s227 = sphi 0, %s225
      %s228 = sphi 0, %s227
      %s242 = sphi 0, %s228
      %s246 = sphi 0, %s246
      %s248 = sphi 0, %s246
      %s249 = sphi 0, %s248
      %s263 = sphi 0, %s249
      %s267 = sphi 0, %s267
      %s269 = sphi 0, %s267
      %s270 = sphi 0, %s269
      %s284 = sphi 0, %s270
      %s288 = sphi 0, %s288
      %s290 = sphi 0, %s288
      %s291 = sphi 0, %s290
      %s305 = sphi 0, %s291
      %s309 = sphi 0, %s309
      %s311 = sphi 0, %s309
      %s312 = sphi 0, %s311
      %s326 = sphi 0, %s312
      %s332 = sphi 0, %s334
      %s335 = sphi 0, %s332
      %s336 = sphi 0, %s335
      %s352 = sphi 0, %s336
    $region4: #{tpu_custom_call.1} parent=1 // loop_header_branch
      %26 = sbr.rel (%p24) target = $region8
    $region5: #{tpu_custom_call.1} parent=1 // loop_body
      %s28 = ssub.s32 %s23, 1
      %s29 = ssub.s32 %s23, 2
      %s30 = sadd.s32 %s23, 1
      %s31 = ssub.s32 %s23, %s30
      %p32 = scmp.eq.s32.totalorder %s31, 0
      %s34 = sadd.s32 %s33, 1
      %s35 = scalar_select %p32, %s33, %s34
      %p38 = pneg %p32
      %p39 = scmp.eq.s32.totalorder %s23, 1
      %p40 = por %p38, %p39
      %p41 = scmp.ne.s32.totalorder %s33, %s36
      %p42 = scmp.eq.s32.totalorder %s23, 0
      %p43 = por %p41, %p42
      %p44 = scmp.ne.s32.totalorder %s33, %s36
      %p45 = scmp.eq.s32.totalorder %s28, 1
      %p46 = por %p44, %p45
      %p47 = scmp.ne.s32.totalorder %s36, %s37
      %p48 = scmp.eq.s32.totalorder %s28, 0
      %p49 = por %p47, %p48
      %p50 = scmp.ne.s32.totalorder %s36, %s37
      %p51 = scmp.eq.s32.totalorder %s29, 1
      %p52 = por %p50, %p51
      %p54 = scmp.ne.s32.totalorder %s37, %s53
      %p55 = scmp.eq.s32.totalorder %s29, 0
      %p56 = por %p54, %p55
      %s58 = sadd.s32 %s57, 1
      %p61 = scmp.eq.s32.totalorder %s23, 1
      %p62 = scmp.ne.s32.totalorder %s57, %s59
      %p63 = scmp.eq.s32.totalorder %s23, 0
      %p64 = por %p62, %p63
      %p65 = scmp.ne.s32.totalorder %s57, %s59
      %p66 = scmp.eq.s32.totalorder %s28, 1
      %p67 = por %p65, %p66
      %p68 = scmp.ne.s32.totalorder %s59, %s60
      %p69 = scmp.eq.s32.totalorder %s28, 0
      %p70 = por %p68, %p69
      %p71 = scmp.ne.s32.totalorder %s59, %s60
      %p72 = scmp.eq.s32.totalorder %s29, 1
      %p73 = por %p71, %p72
      %p75 = scmp.ne.s32.totalorder %s60, %s74
      %p76 = scmp.eq.s32.totalorder %s29, 0
      %p77 = por %p75, %p76
      %s79 = sadd.s32 %s78, 1
      %p82 = scmp.eq.s32.totalorder %s23, 1
      %p83 = scmp.ne.s32.totalorder %s78, %s80
      %p84 = scmp.eq.s32.totalorder %s23, 0
      %p85 = por %p83, %p84
      %p86 = scmp.ne.s32.totalorder %s78, %s80
      %p87 = scmp.eq.s32.totalorder %s28, 1
      %p88 = por %p86, %p87
      %p89 = scmp.ne.s32.totalorder %s80, %s81
      %p90 = scmp.eq.s32.totalorder %s28, 0
      %p91 = por %p89, %p90
      %p92 = scmp.ne.s32.totalorder %s80, %s81
      %p93 = scmp.eq.s32.totalorder %s29, 1
      %p94 = por %p92, %p93
      %p96 = scmp.ne.s32.totalorder %s81, %s95
      %p97 = scmp.eq.s32.totalorder %s29, 0
      %p98 = por %p96, %p97
      %s100 = sadd.s32 %s99, 1
      %p103 = scmp.eq.s32.totalorder %s23, 1
      %p104 = scmp.ne.s32.totalorder %s99, %s101
      %p105 = scmp.eq.s32.totalorder %s23, 0
      %p106 = por %p104, %p105
      %p107 = scmp.ne.s32.totalorder %s99, %s101
      %p108 = scmp.eq.s32.totalorder %s28, 1
      %p109 = por %p107, %p108
      %p110 = scmp.ne.s32.totalorder %s101, %s102
      %p111 = scmp.eq.s32.totalorder %s28, 0
      %p112 = por %p110, %p111
      %p113 = scmp.ne.s32.totalorder %s101, %s102
      %p114 = scmp.eq.s32.totalorder %s29, 1
      %p115 = por %p113, %p114
      %p117 = scmp.ne.s32.totalorder %s102, %s116
      %p118 = scmp.eq.s32.totalorder %s29, 0
      %p119 = por %p117, %p118
      %s121 = sadd.s32 %s120, 1
      %p124 = scmp.eq.s32.totalorder %s23, 1
      %p125 = scmp.ne.s32.totalorder %s120, %s122
      %p126 = scmp.eq.s32.totalorder %s23, 0
      %p127 = por %p125, %p126
      %p128 = scmp.ne.s32.totalorder %s120, %s122
      %p129 = scmp.eq.s32.totalorder %s28, 1
      %p130 = por %p128, %p129
      %p131 = scmp.ne.s32.totalorder %s122, %s123
      %p132 = scmp.eq.s32.totalorder %s28, 0
      %p133 = por %p131, %p132
      %p134 = scmp.ne.s32.totalorder %s122, %s123
      %p135 = scmp.eq.s32.totalorder %s29, 1
      %p136 = por %p134, %p135
      %p138 = scmp.ne.s32.totalorder %s123, %s137
      %p139 = scmp.eq.s32.totalorder %s29, 0
      %p140 = por %p138, %p139
      %s142 = sadd.s32 %s141, 1
      %p145 = scmp.eq.s32.totalorder %s23, 1
      %p146 = scmp.ne.s32.totalorder %s141, %s143
      %p147 = scmp.eq.s32.totalorder %s23, 0
      %p148 = por %p146, %p147
      %p149 = scmp.ne.s32.totalorder %s141, %s143
      %p150 = scmp.eq.s32.totalorder %s28, 1
      %p151 = por %p149, %p150
      %p152 = scmp.ne.s32.totalorder %s143, %s144
      %p153 = scmp.eq.s32.totalorder %s28, 0
      %p154 = por %p152, %p153
      %p155 = scmp.ne.s32.totalorder %s143, %s144
      %p156 = scmp.eq.s32.totalorder %s29, 1
      %p157 = por %p155, %p156
      %p159 = scmp.ne.s32.totalorder %s144, %s158
      %p160 = scmp.eq.s32.totalorder %s29, 0
      %p161 = por %p159, %p160
      %s163 = sadd.s32 %s162, 1
      %p166 = scmp.eq.s32.totalorder %s23, 1
      %p167 = scmp.ne.s32.totalorder %s162, %s164
      %p168 = scmp.eq.s32.totalorder %s23, 0
      %p169 = por %p167, %p168
      %p170 = scmp.ne.s32.totalorder %s162, %s164
      %p171 = scmp.eq.s32.totalorder %s28, 1
      %p172 = por %p170, %p171
      %p173 = scmp.ne.s32.totalorder %s164, %s165
      %p174 = scmp.eq.s32.totalorder %s28, 0
      %p175 = por %p173, %p174
      %p176 = scmp.ne.s32.totalorder %s164, %s165
      %p177 = scmp.eq.s32.totalorder %s29, 1
      %p178 = por %p176, %p177
      %p180 = scmp.ne.s32.totalorder %s165, %s179
      %p181 = scmp.eq.s32.totalorder %s29, 0
      %p182 = por %p180, %p181
      %s184 = sadd.s32 %s183, 1
      %p187 = scmp.eq.s32.totalorder %s23, 1
      %p188 = scmp.ne.s32.totalorder %s183, %s185
      %p189 = scmp.eq.s32.totalorder %s23, 0
      %p190 = por %p188, %p189
      %p191 = scmp.ne.s32.totalorder %s183, %s185
      %p192 = scmp.eq.s32.totalorder %s28, 1
      %p193 = por %p191, %p192
      %p194 = scmp.ne.s32.totalorder %s185, %s186
      %p195 = scmp.eq.s32.totalorder %s28, 0
      %p196 = por %p194, %p195
      %p197 = scmp.ne.s32.totalorder %s185, %s186
      %p198 = scmp.eq.s32.totalorder %s29, 1
      %p199 = por %p197, %p198
      %p201 = scmp.ne.s32.totalorder %s186, %s200
      %p202 = scmp.eq.s32.totalorder %s29, 0
      %p203 = por %p201, %p202
      %s205 = sadd.s32 %s204, 1
      %p208 = scmp.eq.s32.totalorder %s23, 1
      %p209 = scmp.ne.s32.totalorder %s204, %s206
      %p210 = scmp.eq.s32.totalorder %s23, 0
      %p211 = por %p209, %p210
      %p212 = scmp.ne.s32.totalorder %s204, %s206
      %p213 = scmp.eq.s32.totalorder %s28, 1
      %p214 = por %p212, %p213
      %p215 = scmp.ne.s32.totalorder %s206, %s207
      %p216 = scmp.eq.s32.totalorder %s28, 0
      %p217 = por %p215, %p216
      %p218 = scmp.ne.s32.totalorder %s206, %s207
      %p219 = scmp.eq.s32.totalorder %s29, 1
      %p220 = por %p218, %p219
      %p222 = scmp.ne.s32.totalorder %s207, %s221
      %p223 = scmp.eq.s32.totalorder %s29, 0
      %p224 = por %p222, %p223
      %s226 = sadd.s32 %s225, 1
      %p229 = scmp.eq.s32.totalorder %s23, 1
      %p230 = scmp.ne.s32.totalorder %s225, %s227
      %p231 = scmp.eq.s32.totalorder %s23, 0
      %p232 = por %p230, %p231
      %p233 = scmp.ne.s32.totalorder %s225, %s227
      %p234 = scmp.eq.s32.totalorder %s28, 1
      %p235 = por %p233, %p234
      %p236 = scmp.ne.s32.totalorder %s227, %s228
      %p237 = scmp.eq.s32.totalorder %s28, 0
      %p238 = por %p236, %p237
      %p239 = scmp.ne.s32.totalorder %s227, %s228
      %p240 = scmp.eq.s32.totalorder %s29, 1
      %p241 = por %p239, %p240
      %p243 = scmp.ne.s32.totalorder %s228, %s242
      %p244 = scmp.eq.s32.totalorder %s29, 0
      %p245 = por %p243, %p244
      %s247 = sadd.s32 %s246, 1
      %p250 = scmp.eq.s32.totalorder %s23, 1
      %p251 = scmp.ne.s32.totalorder %s246, %s248
      %p252 = scmp.eq.s32.totalorder %s23, 0
      %p253 = por %p251, %p252
      %p254 = scmp.ne.s32.totalorder %s246, %s248
      %p255 = scmp.eq.s32.totalorder %s28, 1
      %p256 = por %p254, %p255
      %p257 = scmp.ne.s32.totalorder %s248, %s249
      %p258 = scmp.eq.s32.totalorder %s28, 0
      %p259 = por %p257, %p258
      %p260 = scmp.ne.s32.totalorder %s248, %s249
      %p261 = scmp.eq.s32.totalorder %s29, 1
      %p262 = por %p260, %p261
      %p264 = scmp.ne.s32.totalorder %s249, %s263
      %p265 = scmp.eq.s32.totalorder %s29, 0
      %p266 = por %p264, %p265
      %s268 = sadd.s32 %s267, 1
      %p271 = scmp.eq.s32.totalorder %s23, 1
      %p272 = scmp.ne.s32.totalorder %s267, %s269
      %p273 = scmp.eq.s32.totalorder %s23, 0
      %p274 = por %p272, %p273
      %p275 = scmp.ne.s32.totalorder %s267, %s269
      %p276 = scmp.eq.s32.totalorder %s28, 1
      %p277 = por %p275, %p276
      %p278 = scmp.ne.s32.totalorder %s269, %s270
      %p279 = scmp.eq.s32.totalorder %s28, 0
      %p280 = por %p278, %p279
      %p281 = scmp.ne.s32.totalorder %s269, %s270
      %p282 = scmp.eq.s32.totalorder %s29, 1
      %p283 = por %p281, %p282
      %p285 = scmp.ne.s32.totalorder %s270, %s284
      %p286 = scmp.eq.s32.totalorder %s29, 0
      %p287 = por %p285, %p286
      %s289 = sadd.s32 %s288, 1
      %p292 = scmp.eq.s32.totalorder %s23, 1
      %p293 = scmp.ne.s32.totalorder %s288, %s290
      %p294 = scmp.eq.s32.totalorder %s23, 0
      %p295 = por %p293, %p294
      %p296 = scmp.ne.s32.totalorder %s288, %s290
      %p297 = scmp.eq.s32.totalorder %s28, 1
      %p298 = por %p296, %p297
      %p299 = scmp.ne.s32.totalorder %s290, %s291
      %p300 = scmp.eq.s32.totalorder %s28, 0
      %p301 = por %p299, %p300
      %p302 = scmp.ne.s32.totalorder %s290, %s291
      %p303 = scmp.eq.s32.totalorder %s29, 1
      %p304 = por %p302, %p303
      %p306 = scmp.ne.s32.totalorder %s291, %s305
      %p307 = scmp.eq.s32.totalorder %s29, 0
      %p308 = por %p306, %p307
      %s310 = sadd.s32 %s309, 1
      %p313 = scmp.eq.s32.totalorder %s23, 1
      %p314 = scmp.ne.s32.totalorder %s309, %s311
      %p315 = scmp.eq.s32.totalorder %s23, 0
      %p316 = por %p314, %p315
      %p317 = scmp.ne.s32.totalorder %s309, %s311
      %p318 = scmp.eq.s32.totalorder %s28, 1
      %p319 = por %p317, %p318
      %p320 = scmp.ne.s32.totalorder %s311, %s312
      %p321 = scmp.eq.s32.totalorder %s28, 0
      %p322 = por %p320, %p321
      %p323 = scmp.ne.s32.totalorder %s311, %s312
      %p324 = scmp.eq.s32.totalorder %s29, 1
      %p325 = por %p323, %p324
      %p327 = scmp.ne.s32.totalorder %s312, %s326
      %p328 = scmp.eq.s32.totalorder %s29, 0
      %p329 = por %p327, %p328
      %s330 = ssub.s32 %s23, %s30
      %p331 = scmp.eq.s32.totalorder %s330, 0
      %s333 = sadd.s32 %s332, 1
      %s334 = scalar_select %p331, %s332, %s333
      %p337 = pneg %p331
      %p338 = scmp.eq.s32.totalorder %s23, 1
      %p339 = por %p337, %p338
      %p340 = scmp.ne.s32.totalorder %s332, %s335
      %p341 = scmp.eq.s32.totalorder %s23, 0
      %p342 = por %p340, %p341
      %p343 = scmp.ne.s32.totalorder %s332, %s335
      %p344 = scmp.eq.s32.totalorder %s28, 1
      %p345 = por %p343, %p344
      %p346 = scmp.ne.s32.totalorder %s335, %s336
      %p347 = scmp.eq.s32.totalorder %s28, 0
      %p348 = por %p346, %p347
      %p349 = scmp.ne.s32.totalorder %s335, %s336
      %p350 = scmp.eq.s32.totalorder %s29, 1
      %p351 = por %p349, %p350
      %p353 = scmp.ne.s32.totalorder %s336, %s352
      %p354 = scmp.eq.s32.totalorder %s29, 0
      %p355 = por %p353, %p354
      %p356 = scmp.le.s32.totalorder 1, %s23
      %p357 = scmp.lt.s32.totalorder %s23, 3
      %p358 = pnand %p356, %p357
      %p359 = pneg %p358
      // Predicated region
      $region9: #{tpu_custom_call.1} parent=5 // pred_check
        _
      $region10: #{tpu_custom_call.1} parent=5 // pred_check_branch
        %361 = sbr.rel (%p358) target = $region12
      $region11: #{tpu_custom_call.1} parent=5 // pred_region
        %s362 = ssub.s32 %s23, 1
        // Predicated region
        $region13: #{tpu_custom_call.1} parent=11 // pred_check
          %p363 = pneg %p70
        $region14: #{tpu_custom_call.1} parent=11 // pred_check_branch
          %365 = sbr.rel (%p363) target = $region16
        $region15: #{tpu_custom_call.1} parent=11 // pred_region
          _
        $region16: #{tpu_custom_call.1} parent=11 // pred_fallthru
          _
        // Predicated region
        $region17: #{tpu_custom_call.1} parent=11 // pred_check
          %p366 = pneg %p91
        $region18: #{tpu_custom_call.1} parent=11 // pred_check_branch
          %368 = sbr.rel (%p366) target = $region20
        $region19: #{tpu_custom_call.1} parent=11 // pred_region
          _
        $region20: #{tpu_custom_call.1} parent=11 // pred_fallthru
          _
        // Predicated region
        $region21: #{tpu_custom_call.1} parent=11 // pred_check
          %p369 = pneg %p112
        $region22: #{tpu_custom_call.1} parent=11 // pred_check_branch
          %371 = sbr.rel (%p369) target = $region24
        $region23: #{tpu_custom_call.1} parent=11 // pred_region
          _
        $region24: #{tpu_custom_call.1} parent=11 // pred_fallthru
          _
        // Predicated region
        $region25: #{tpu_custom_call.1} parent=11 // pred_check
          %p372 = pneg %p133
        $region26: #{tpu_custom_call.1} parent=11 // pred_check_branch
          %374 = sbr.rel (%p372) target = $region28
        $region27: #{tpu_custom_call.1} parent=11 // pred_region
          _
        $region28: #{tpu_custom_call.1} parent=11 // pred_fallthru
          _
        // Predicated region
        $region29: #{tpu_custom_call.1} parent=11 // pred_check
          %p375 = pneg %p154
        $region30: #{tpu_custom_call.1} parent=11 // pred_check_branch
          %377 = sbr.rel (%p375) target = $region32
        $region31: #{tpu_custom_call.1} parent=11 // pred_region
          _
        $region32: #{tpu_custom_call.1} parent=11 // pred_fallthru
          _
        // Predicated region
        $region33: #{tpu_custom_call.1} parent=11 // pred_check
          %p378 = pneg %p175
        $region34: #{tpu_custom_call.1} parent=11 // pred_check_branch
          %380 = sbr.rel (%p378) target = $region36
        $region35: #{tpu_custom_call.1} parent=11 // pred_region
          _
        $region36: #{tpu_custom_call.1} parent=11 // pred_fallthru
          _
        // Predicated region
        $region37: #{tpu_custom_call.1} parent=11 // pred_check
          %p381 = pneg %p196
        $region38: #{tpu_custom_call.1} parent=11 // pred_check_branch
          %383 = sbr.rel (%p381) target = $region40
        $region39: #{tpu_custom_call.1} parent=11 // pred_region
          _
        $region40: #{tpu_custom_call.1} parent=11 // pred_fallthru
          _
        // Predicated region
        $region41: #{tpu_custom_call.1} parent=11 // pred_check
          %p384 = pneg %p217
        $region42: #{tpu_custom_call.1} parent=11 // pred_check_branch
          %386 = sbr.rel (%p384) target = $region44
        $region43: #{tpu_custom_call.1} parent=11 // pred_region
          _
        $region44: #{tpu_custom_call.1} parent=11 // pred_fallthru
          _
        // Predicated region
        $region45: #{tpu_custom_call.1} parent=11 // pred_check
          %p387 = pneg %p238
        $region46: #{tpu_custom_call.1} parent=11 // pred_check_branch
          %389 = sbr.rel (%p387) target = $region48
        $region47: #{tpu_custom_call.1} parent=11 // pred_region
          _
        $region48: #{tpu_custom_call.1} parent=11 // pred_fallthru
          _
        // Predicated region
        $region49: #{tpu_custom_call.1} parent=11 // pred_check
          %p390 = pneg %p259
        $region50: #{tpu_custom_call.1} parent=11 // pred_check_branch
          %392 = sbr.rel (%p390) target = $region52
        $region51: #{tpu_custom_call.1} parent=11 // pred_region
          _
        $region52: #{tpu_custom_call.1} parent=11 // pred_fallthru
          _
        // Predicated region
        $region53: #{tpu_custom_call.1} parent=11 // pred_check
          %p393 = pneg %p280
        $region54: #{tpu_custom_call.1} parent=11 // pred_check_branch
          %395 = sbr.rel (%p393) target = $region56
        $region55: #{tpu_custom_call.1} parent=11 // pred_region
          _
        $region56: #{tpu_custom_call.1} parent=11 // pred_fallthru
          _
        // Predicated region
        $region57: #{tpu_custom_call.1} parent=11 // pred_check
          %p396 = pneg %p301
        $region58: #{tpu_custom_call.1} parent=11 // pred_check_branch
          %398 = sbr.rel (%p396) target = $region60
        $region59: #{tpu_custom_call.1} parent=11 // pred_region
          _
        $region60: #{tpu_custom_call.1} parent=11 // pred_fallthru
          _
        // Predicated region
        $region61: #{tpu_custom_call.1} parent=11 // pred_check
          %p399 = pneg %p322
        $region62: #{tpu_custom_call.1} parent=11 // pred_check_branch
          %401 = sbr.rel (%p399) target = $region64
        $region63: #{tpu_custom_call.1} parent=11 // pred_region
          _
        $region64: #{tpu_custom_call.1} parent=11 // pred_fallthru
          _
      $region12: #{tpu_custom_call.1} parent=5 // pred_fallthru
        _
      %p402 = scmp.lt.s32.totalorder %s23, 2
      // Predicated region
      $region65: #{tpu_custom_call.1} parent=5 // pred_check
        %p403 = pneg %p402
      $region66: #{tpu_custom_call.1} parent=5 // pred_check_branch
        %405 = sbr.rel (%p403) target = $region68
      $region67: #{tpu_custom_call.1} parent=5 // pred_region
        // Predicated region
        $region69: #{tpu_custom_call.1} parent=67 // pred_check
          %p406 = pneg %p43
        $region70: #{tpu_custom_call.1} parent=67 // pred_check_branch
          %408 = sbr.rel (%p406) target = $region72
        $region71: #{tpu_custom_call.1} parent=67 // pred_region
          %p409 = scmp.lt.s32.totalorder %s23, 1
          %s410 = scalar_select %p409, %s23, 1
          %s411 = smul.addr %s410, 8
          %s412 = scalar_lea.vmem %s0, %s411
        $region72: #{tpu_custom_call.1} parent=67 // pred_fallthru
          _
      $region68: #{tpu_custom_call.1} parent=5 // pred_fallthru
        _
      %p413 = scmp.le.s32.totalorder 1, %s23
      %p414 = scmp.lt.s32.totalorder %s23, 3
      %p415 = pnand %p413, %p414
      %p416 = pneg %p415
      // Predicated region
      $region73: #{tpu_custom_call.1} parent=5 // pred_check
        _
      $region74: #{tpu_custom_call.1} parent=5 // pred_check_branch
        %418 = sbr.rel (%p415) target = $region76
      $region75: #{tpu_custom_call.1} parent=5 // pred_region
        %s419 = ssub.s32 %s23, 1
        %p420 = scmp.lt.s32.totalorder %s28, 1
        %s421 = scalar_select %p420, %s28, 1
        %s422 = smul.addr %s421, 8
        %s423 = scalar_lea.vmem %s0, %s422
        %p424 = pneg %p49
        %p425 = pneg %p46
        %p426 = pneg %p70
        %p427 = pneg %p67
        %p428 = pneg %p91
        %p429 = pneg %p88
        %p430 = pneg %p112
        %p431 = pneg %p109
        %p432 = pneg %p133
        %p433 = pneg %p130
        %p434 = pneg %p154
        %p435 = pneg %p151
        %p436 = pneg %p175
        %p437 = pneg %p172
        %p438 = pneg %p196
        %p439 = pneg %p193
        %p440 = pneg %p217
        %p441 = pneg %p214
        %p442 = pneg %p238
        %p443 = pneg %p235
        %p444 = pneg %p259
        %p445 = pneg %p256
        %p446 = pneg %p280
        %p447 = pneg %p277
        %p448 = pneg %p301
        %p449 = pneg %p298
        %p450 = pneg %p322
        %p451 = pneg %p319
        %p452 = pneg %p348
        %p453 = pneg %p345
        %s454 = sand.u32 %s335, 1
        %s455 = scalar_lea.sflag [#allocation4], %s454
        %s456 = sand.u32 %s335, 1
        %s457 = smul.addr %s456, 8
        %s458 = scalar_lea.vmem [#allocation3], %s457
        %p459 = scmp.lt.s32.totalorder %s28, 1
        %s460 = scalar_select %p459, %s28, 1
        %s461 = smul.addr %s460, 8
        %s462 = scalar_lea.vmem %s0, %s461
        %v464 = vld [vmem:[%s462] sm:$0xff]
        %vm465 = vcmask 261120
        %v466 = vsel %vm465, %v464, 0.0
        %467 = vadd.xlane.f32.xlu0 %v466
        %v468 = vpop.xlane.xlu0 %467
        %v469 = vrcp.pop 32.0
        %v470 = vmul.f32 %v468, %v469
        %v471 = vsub.f32 %v464, %v470
        %v472 = vmul.f32 %v471, %v471
        %v473 = vsel %vm465, %v472, 0.0
        %474 = vadd.xlane.f32.xlu0 %v473
        %v475 = vpop.xlane.xlu0 %474
        %v476 = vmul.f32 %v475, %v469
        %v477 = vadd.f32 %v476, 1e-05
        %v478 = vrsqrt.pop %v477
        %v479 = vmul.f32 %v471, %v478
        %v480 = vld [vmem:[%s2] sm:$0x1]
        %v482 = vlaneseq
        %v483 = vshrl.u32 %v482, 7
        %v484 = vsub.s32 0, %v483
        %v485 = vrot.slane %v480, %v484
        %v487 = vmul.f32 %v479, %v485
        %v488 = vld [vmem:[%s3] sm:$0x1]
        %v490 = vlaneseq
        %v491 = vshrl.u32 %v490, 7
        %v492 = vsub.s32 0, %v491
        %v493 = vrot.slane %v488, %v492
        %v495 = vadd.f32 %v487, %v493
        %v496 = vpack.c.bf16 %v495, %v495
        %v497 = vld [vmem:[%s4] sm:$0xf]
        %v498 = vld [vmem:[%s4 + $0x4] sm:$0xf]
        %v499 = vld [vmem:[%s4 + $0x8] sm:$0xf]
        %v500 = vld [vmem:[%s4 + $0xc] sm:$0xf]
        %v501 = vld [vmem:[%s5] sm:$0x1]
        %v503 = vlaneseq
        %v504 = vshrl.u32 %v503, 7
        %v505 = vsub.s32 0, %v504
        %v506 = vrot.slane %v501, %v505
        %v512 = vunpack.c.l.b16 %v497
        %v513 = vunpack.c.l.b16 %v498
        %v514 = vunpack.c.l.b16 %v499
        %v515 = vunpack.c.l.b16 %v500
        %v516 = vpack.c.b16 %v513, %v512
        %v517 = vpack.c.b16 %v515, %v514
        %v521 = vsel %vm465, %v496, 0
        %523 = vmatprep.subr.bf16.mxu0 0
        %524 = vmatpush1.bf16.msra.mxu0 0
        %525 = vmatprep.subr.bf16.mxu0 0
        %526 = vmatpush1.bf16.msra.mxu0 0
        %527 = vmatprep.subr.bf16.mxu0 0
        %528 = vmatpush1.bf16.msra.mxu0 0
        %529 = vmatprep.subr.bf16.mxu0 0
        %530 = vmatpush1.bf16.msra.mxu0 0
        %531 = vmatprep.subr.bf16.mxu0 0
        %532 = vmatpush1.bf16.msra.mxu0 0
        %533 = vmatprep.subr.bf16.mxu0 0
        %534 = vmatpush1.bf16.msra.mxu0 0
        %535 = vmatprep.subr.bf16.mxu0 0
        %536 = vmatpush1.bf16.msra.mxu0 %v517
        %537 = vmatprep.subr.bf16.mxu0 0
        %538 = vmatpush1.bf16.msra.mxu0 %v516
        %539 = vmatprep.subr.bf16.mxu0 0
        %540 = vmatpush2.bf16.msra.mxu0 0
        %541 = vmatprep.subr.bf16.mxu0 0
        %542 = vmatpush2.bf16.msra.mxu0 0
        %543 = vmatprep.subr.bf16.mxu0 0
        %544 = vmatpush2.bf16.msra.mxu0 0
        %545 = vmatprep.subr.bf16.mxu0 0
        %546 = vmatpush2.bf16.msra.mxu0 0
        %547 = vmatprep.subr.bf16.mxu0 0
        %548 = vmatpush2.bf16.msra.mxu0 0
        %549 = vmatprep.subr.bf16.mxu0 0
        %550 = vmatpush2.bf16.msra.mxu0 0
        %551 = vmatprep.subr.bf16.mxu0 0
        %552 = vmatpush2.bf16.msra.mxu0 0
        %553 = vmatprep.subr.bf16.mxu0 0
        %554 = vmatpush2.bf16.msra.mxu0 0
        %555 = vmatprep.mubr.bf16.mxu0 0
        %556 = vmatmul.mubr.bf16.gmra.mxu0 %v521
        %v557 = vpop.f32.mrf.mxu0
        %v558 = vadd.f32 %v506, %v557
        %v559 = vpop.f32.mrf.mxu0
        %v560 = vpop.f32.mrf.mxu0
        %v561 = vpop.f32.mrf.mxu0
        %562 = vdwg.mxu0
        %v563 = vld [vmem:[%s6] sm:$0xf]
        %v564 = vld [vmem:[%s6 + $0x4] sm:$0xf]
        %v565 = vld [vmem:[%s6 + $0x8] sm:$0xf]
        %v566 = vld [vmem:[%s6 + $0xc] sm:$0xf]
        %v567 = vld [vmem:[%s7] sm:$0x1]
        %v569 = vlaneseq
        %v570 = vshrl.u32 %v569, 7
        %v571 = vsub.s32 0, %v570
        %v572 = vrot.slane %v567, %v571
        %v578 = vunpack.c.l.b16 %v563
        %v579 = vunpack.c.l.b16 %v564
        %v580 = vunpack.c.l.b16 %v565
        %v581 = vunpack.c.l.b16 %v566
        %v582 = vpack.c.b16 %v579, %v578
        %v583 = vpack.c.b16 %v581, %v580
        %586 = vmatprep.subr.bf16.mxu0 0
        %587 = vmatpush1.bf16.msra.mxu0 0
        %588 = vmatprep.subr.bf16.mxu0 0
        %589 = vmatpush1.bf16.msra.mxu0 0
        %590 = vmatprep.subr.bf16.mxu0 0
        %591 = vmatpush1.bf16.msra.mxu0 0
        %592 = vmatprep.subr.bf16.mxu0 0
        %593 = vmatpush1.bf16.msra.mxu0 0
        %594 = vmatprep.subr.bf16.mxu0 0
        %595 = vmatpush1.bf16.msra.mxu0 0
        %596 = vmatprep.subr.bf16.mxu0 0
        %597 = vmatpush1.bf16.msra.mxu0 0
        %598 = vmatprep.subr.bf16.mxu0 0
        %599 = vmatpush1.bf16.msra.mxu0 %v583
        %600 = vmatprep.subr.bf16.mxu0 0
        %601 = vmatpush1.bf16.msra.mxu0 %v582
        %602 = vmatprep.subr.bf16.mxu0 0
        %603 = vmatpush2.bf16.msra.mxu0 0
        %604 = vmatprep.subr.bf16.mxu0 0
        %605 = vmatpush2.bf16.msra.mxu0 0
        %606 = vmatprep.subr.bf16.mxu0 0
        %607 = vmatpush2.bf16.msra.mxu0 0
        %608 = vmatprep.subr.bf16.mxu0 0
        %609 = vmatpush2.bf16.msra.mxu0 0
        %610 = vmatprep.subr.bf16.mxu0 0
        %611 = vmatpush2.bf16.msra.mxu0 0
        %612 = vmatprep.subr.bf16.mxu0 0
        %613 = vmatpush2.bf16.msra.mxu0 0
        %614 = vmatprep.subr.bf16.mxu0 0
        %615 = vmatpush2.bf16.msra.mxu0 0
        %616 = vmatprep.subr.bf16.mxu0 0
        %617 = vmatpush2.bf16.msra.mxu0 0
        %618 = vmatprep.mubr.bf16.mxu0 0
        %619 = vmatmul.mubr.bf16.gmra.mxu0 %v521
        %v620 = vpop.f32.mrf.mxu0
        %v621 = vadd.f32 %v572, %v620
        %v622 = vpop.f32.mrf.mxu0
        %v623 = vpop.f32.mrf.mxu0
        %v624 = vpop.f32.mrf.mxu0
        %625 = vdwg.mxu0
        %v626 = vpack.c.bf16 %v621, %v621
        %v627 = vld [vmem:[%s8] sm:$0xf]
        %v628 = vld [vmem:[%s8 + $0x4] sm:$0xf]
        %v629 = vld [vmem:[%s8 + $0x8] sm:$0xf]
        %v630 = vld [vmem:[%s8 + $0xc] sm:$0xf]
        %v631 = vld [vmem:[%s9] sm:$0x1]
        %v633 = vlaneseq
        %v634 = vshrl.u32 %v633, 7
        %v635 = vsub.s32 0, %v634
        %v636 = vrot.slane %v631, %v635
        %v642 = vunpack.c.l.b16 %v627
        %v643 = vunpack.c.l.b16 %v628
        %v644 = vunpack.c.l.b16 %v629
        %v645 = vunpack.c.l.b16 %v630
        %v646 = vpack.c.b16 %v643, %v642
        %v647 = vpack.c.b16 %v645, %v644
        %650 = vmatprep.subr.bf16.mxu0 0
        %651 = vmatpush1.bf16.msra.mxu0 0
        %652 = vmatprep.subr.bf16.mxu0 0
        %653 = vmatpush1.bf16.msra.mxu0 0
        %654 = vmatprep.subr.bf16.mxu0 0
        %655 = vmatpush1.bf16.msra.mxu0 0
        %656 = vmatprep.subr.bf16.mxu0 0
        %657 = vmatpush1.bf16.msra.mxu0 0
        %658 = vmatprep.subr.bf16.mxu0 0
        %659 = vmatpush1.bf16.msra.mxu0 0
        %660 = vmatprep.subr.bf16.mxu0 0
        %661 = vmatpush1.bf16.msra.mxu0 0
        %662 = vmatprep.subr.bf16.mxu0 0
        %663 = vmatpush1.bf16.msra.mxu0 %v647
        %664 = vmatprep.subr.bf16.mxu0 0
        %665 = vmatpush1.bf16.msra.mxu0 %v646
        %666 = vmatprep.subr.bf16.mxu0 0
        %667 = vmatpush2.bf16.msra.mxu0 0
        %668 = vmatprep.subr.bf16.mxu0 0
        %669 = vmatpush2.bf16.msra.mxu0 0
        %670 = vmatprep.subr.bf16.mxu0 0
        %671 = vmatpush2.bf16.msra.mxu0 0
        %672 = vmatprep.subr.bf16.mxu0 0
        %673 = vmatpush2.bf16.msra.mxu0 0
        %674 = vmatprep.subr.bf16.mxu0 0
        %675 = vmatpush2.bf16.msra.mxu0 0
        %676 = vmatprep.subr.bf16.mxu0 0
        %677 = vmatpush2.bf16.msra.mxu0 0
        %678 = vmatprep.subr.bf16.mxu0 0
        %679 = vmatpush2.bf16.msra.mxu0 0
        %680 = vmatprep.subr.bf16.mxu0 0
        %681 = vmatpush2.bf16.msra.mxu0 0
        %682 = vmatprep.mubr.bf16.mxu0 0
        %683 = vmatmul.mubr.bf16.gmra.mxu0 %v521
        %v684 = vpop.f32.mrf.mxu0
        %v685 = vadd.f32 %v636, %v684
        %v686 = vpop.f32.mrf.mxu0
        %v687 = vpop.f32.mrf.mxu0
        %v688 = vpop.f32.mrf.mxu0
        %689 = vdwg.mxu0
        %v690 = vpack.c.bf16 %v685, %v685
        %v691 = vld [vmem:[%s10] sm:$0x1]
        %v693 = vlaneseq
        %v694 = vshrl.u32 %v693, 7
        %v695 = vsub.s32 0, %v694
        %v696 = vrot.slane %v691, %v695
        %v698 = vadd.f32 %v558, %v696
        %v699 = vmul.f32 %v698, 0.35355338
        %v700 = vpack.c.bf16 %v699, %v699
        %v701 = vld [vmem:[%s11] sm:$0x1]
        %v703 = vlaneseq
        %v704 = vshrl.u32 %v703, 7
        %v705 = vsub.s32 0, %v704
        %v706 = vrot.slane %v701, %v705
        %v708 = vadd.f32 %v558, %v706
        %v709 = vmul.f32 %v708, 0.35355338
        %v710 = vpack.c.bf16 %v709, %v709
        %v711 = vld [vmem:[%s1] sm:$0xf]
        %v712 = vld [vmem:[%s1 + $0x4] sm:$0xf]
        %v713 = vld [vmem:[%s1 + $0x8] sm:$0xf]
        %v714 = vld [vmem:[%s1 + $0xc] sm:$0xf]
        %v715 = vld [vmem:[%s1 + $0x10] sm:$0xf]
        %v716 = vld [vmem:[%s1 + $0x14] sm:$0xf]
        %v717 = vld [vmem:[%s1 + $0x18] sm:$0xf]
        %v718 = vld [vmem:[%s1 + $0x1c] sm:$0xf]
        %v719 = vld [vmem:[%s1 + $0x20] sm:$0xf]
        %v720 = vld [vmem:[%s1 + $0x24] sm:$0xf]
        %v721 = vld [vmem:[%s1 + $0x28] sm:$0xf]
        %v722 = vld [vmem:[%s1 + $0x2c] sm:$0xf]
        %v723 = vld [vmem:[%s1 + $0x30] sm:$0xf]
        %v724 = vld [vmem:[%s1 + $0x34] sm:$0xf]
        %v725 = vld [vmem:[%s1 + $0x38] sm:$0xf]
        %v726 = vld [vmem:[%s1 + $0x3c] sm:$0xf]
        %v743 = vunpack.c.l.b16 %v711
        %v744 = vunpack.c.l.b16 %v712
        %v745 = vunpack.c.l.b16 %v713
        %v746 = vunpack.c.l.b16 %v714
        %v747 = vunpack.c.l.b16 %v715
        %v748 = vunpack.c.l.b16 %v716
        %v749 = vunpack.c.l.b16 %v717
        %v750 = vunpack.c.l.b16 %v718
        %v751 = vunpack.c.l.b16 %v719
        %v752 = vunpack.c.l.b16 %v720
        %v753 = vunpack.c.l.b16 %v721
        %v754 = vunpack.c.l.b16 %v722
        %v755 = vunpack.c.l.b16 %v723
        %v756 = vunpack.c.l.b16 %v724
        %v757 = vunpack.c.l.b16 %v725
        %v758 = vunpack.c.l.b16 %v726
        %v759 = vpack.c.b16 %v744, %v743
        %v760 = vpack.c.b16 %v746, %v745
        %v761 = vpack.c.b16 %v748, %v747
        %v762 = vpack.c.b16 %v750, %v749
        %v763 = vpack.c.b16 %v752, %v751
        %v764 = vpack.c.b16 %v754, %v753
        %v765 = vpack.c.b16 %v756, %v755
        %v766 = vpack.c.b16 %v758, %v757
        %vm767 = vcmask 64512
        %v769 = vsel %vm767, %v710, 0
        %v772 = vsel %vm767, %v759, 0
        %v775 = vsel %vm767, %v760, 0
        %v778 = vsel %vm767, %v761, 0
        %v781 = vsel %vm767, %v762, 0
        %v784 = vsel %vm767, %v763, 0
        %v787 = vsel %vm767, %v764, 0
        %v790 = vsel %vm767, %v765, 0
        %v793 = vsel %vm767, %v766, 0
        %795 = vmatprep.subr.bf16.mxu0 0
        %796 = vmatpush1.bf16.xpose.msra.mxu0 %v793
        %797 = vmatprep.subr.bf16.mxu0 0
        %798 = vmatpush1.bf16.xpose.msra.mxu0 %v790
        %799 = vmatprep.subr.bf16.mxu0 0
        %800 = vmatpush1.bf16.xpose.msra.mxu0 %v787
        %801 = vmatprep.subr.bf16.mxu0 0
        %802 = vmatpush1.bf16.xpose.msra.mxu0 %v784
        %803 = vmatprep.subr.bf16.mxu0 0
        %804 = vmatpush1.bf16.xpose.msra.mxu0 %v781
        %805 = vmatprep.subr.bf16.mxu0 0
        %806 = vmatpush1.bf16.xpose.msra.mxu0 %v778
        %807 = vmatprep.subr.bf16.mxu0 0
        %808 = vmatpush1.bf16.xpose.msra.mxu0 %v775
        %809 = vmatprep.subr.bf16.mxu0 0
        %810 = vmatpush1.bf16.xpose.msra.mxu0 %v772
        %811 = vmatprep.subr.bf16.mxu0 0
        %812 = vmatpush2.bf16.xpose.msra.mxu0 0
        %813 = vmatprep.subr.bf16.mxu0 0
        %814 = vmatpush2.bf16.xpose.msra.mxu0 0
        %815 = vmatprep.subr.bf16.mxu0 0
        %816 = vmatpush2.bf16.xpose.msra.mxu0 0
        %817 = vmatprep.subr.bf16.mxu0 0
        %818 = vmatpush2.bf16.xpose.msra.mxu0 0
        %819 = vmatprep.subr.bf16.mxu0 0
        %820 = vmatpush2.bf16.xpose.msra.mxu0 0
        %821 = vmatprep.subr.bf16.mxu0 0
        %822 = vmatpush2.bf16.xpose.msra.mxu0 0
        %823 = vmatprep.subr.bf16.mxu0 0
        %824 = vmatpush2.bf16.xpose.msra.mxu0 0
        %825 = vmatprep.subr.bf16.mxu0 0
        %826 = vmatpush2.bf16.xpose.msra.mxu0 0
        %827 = vmatprep.mubr.bf16.mxu0 0
        %828 = vmatmul.mubr.bf16.gmra.mxu0 %v769
        %v829 = vpop.f32.mrf.mxu0
        %v830 = vadd.f32 0.0, %v829
        %v831 = vpop.f32.mrf.mxu0
        %v832 = vpop.f32.mrf.mxu0
        %v833 = vpop.f32.mrf.mxu0
        %834 = vdwg.mxu0
        %s836 = sor.u32 256, 121
        %837 = vrot.lane.b32.xlu0 %v830, %s836
        %v838 = vpop.permute.xlu0 %837
        %v840 = vsel %vm767, %v700, 0
        %v843 = vsel %vm767, %v626, 0
        %845 = vmatprep.subr.bf16.mxu0 0
        %846 = vmatpush1.bf16.xpose.msra.mxu0 0
        %847 = vmatprep.subr.bf16.mxu0 0
        %848 = vmatpush1.bf16.xpose.msra.mxu0 0
        %849 = vmatprep.subr.bf16.mxu0 0
        %850 = vmatpush1.bf16.xpose.msra.mxu0 0
        %851 = vmatprep.subr.bf16.mxu0 0
        %852 = vmatpush1.bf16.xpose.msra.mxu0 0
        %853 = vmatprep.subr.bf16.mxu0 0
        %854 = vmatpush1.bf16.xpose.msra.mxu0 0
        %855 = vmatprep.subr.bf16.mxu0 0
        %856 = vmatpush1.bf16.xpose.msra.mxu0 0
        %857 = vmatprep.subr.bf16.mxu0 0
        %858 = vmatpush1.bf16.xpose.msra.mxu0 0
        %859 = vmatprep.subr.bf16.mxu0 0
        %860 = vmatpush1.bf16.xpose.msra.mxu0 %v843
        %861 = vmatprep.subr.bf16.mxu0 0
        %862 = vmatpush2.bf16.xpose.msra.mxu0 0
        %863 = vmatprep.subr.bf16.mxu0 0
        %864 = vmatpush2.bf16.xpose.msra.mxu0 0
        %865 = vmatprep.subr.bf16.mxu0 0
        %866 = vmatpush2.bf16.xpose.msra.mxu0 0
        %867 = vmatprep.subr.bf16.mxu0 0
        %868 = vmatpush2.bf16.xpose.msra.mxu0 0
        %869 = vmatprep.subr.bf16.mxu0 0
        %870 = vmatpush2.bf16.xpose.msra.mxu0 0
        %871 = vmatprep.subr.bf16.mxu0 0
        %872 = vmatpush2.bf16.xpose.msra.mxu0 0
        %873 = vmatprep.subr.bf16.mxu0 0
        %874 = vmatpush2.bf16.xpose.msra.mxu0 0
        %875 = vmatprep.subr.bf16.mxu0 0
        %876 = vmatpush2.bf16.xpose.msra.mxu0 0
        %877 = vmatprep.mubr.bf16.mxu0 0
        %878 = vmatmul.mubr.bf16.gmra.mxu0 %v840
        %v879 = vpop.f32.mrf.mxu0
        %v880 = vadd.f32 %v838, %v879
        %v881 = vpop.f32.mrf.mxu0
        %v882 = vpop.f32.mrf.mxu0
        %v883 = vpop.f32.mrf.mxu0
        %884 = vdwg.mxu0
        %v885 = vsel %vm767, %v880, -inf
        %886 = vmax.xlane.f32.xlu0 %v885
        %v887 = vpop.xlane.xlu0 %886
        %v888 = vsub.f32 %v880, %v887
        %v889 = vmul.f32 %v888, 1.442695
        %v890 = vpow.pop %v889
        %v891 = vsel %vm767, %v890, 0.0
        %892 = vadd.xlane.f32.xlu0 %v891
        %v893 = vpop.xlane.xlu0 %892
        %v894 = vrcp.pop %v893
        %v895 = vmul.f32 %v890, %v894
        %v896 = vpack.c.bf16 %v895, %v895
        %v898 = vsel %vm767, %v896, 0
        %vm900 = vcmask 1043456
        %v902 = vsel %vm900, %v690, 0
        %904 = vmatprep.subr.bf16.mxu0 0
        %905 = vmatpush1.bf16.msra.mxu0 0
        %906 = vmatprep.subr.bf16.mxu0 0
        %907 = vmatpush1.bf16.msra.mxu0 0
        %908 = vmatprep.subr.bf16.mxu0 0
        %909 = vmatpush1.bf16.msra.mxu0 0
        %910 = vmatprep.subr.bf16.mxu0 0
        %911 = vmatpush1.bf16.msra.mxu0 0
        %912 = vmatprep.subr.bf16.mxu0 0
        %913 = vmatpush1.bf16.msra.mxu0 0
        %914 = vmatprep.subr.bf16.mxu0 0
        %915 = vmatpush1.bf16.msra.mxu0 0
        %916 = vmatprep.subr.bf16.mxu0 0
        %917 = vmatpush1.bf16.msra.mxu0 0
        %918 = vmatprep.subr.bf16.mxu0 0
        %919 = vmatpush1.bf16.msra.mxu0 %v902
        %920 = vmatprep.subr.bf16.mxu0 0
        %921 = vmatpush2.bf16.msra.mxu0 0
        %922 = vmatprep.subr.bf16.mxu0 0
        %923 = vmatpush2.bf16.msra.mxu0 0
        %924 = vmatprep.subr.bf16.mxu0 0
        %925 = vmatpush2.bf16.msra.mxu0 0
        %926 = vmatprep.subr.bf16.mxu0 0
        %927 = vmatpush2.bf16.msra.mxu0 0
        %928 = vmatprep.subr.bf16.mxu0 0
        %929 = vmatpush2.bf16.msra.mxu0 0
        %930 = vmatprep.subr.bf16.mxu0 0
        %931 = vmatpush2.bf16.msra.mxu0 0
        %932 = vmatprep.subr.bf16.mxu0 0
        %933 = vmatpush2.bf16.msra.mxu0 0
        %934 = vmatprep.subr.bf16.mxu0 0
        %935 = vmatpush2.bf16.msra.mxu0 0
        %936 = vmatprep.mubr.bf16.mxu0 0
        %937 = vmatmul.mubr.bf16.gmra.mxu0 %v898
        %v938 = vpop.f32.mrf.mxu0
        %v939 = vadd.f32 0.0, %v938
        %v940 = vpop.f32.mrf.mxu0
        %v941 = vpop.f32.mrf.mxu0
        %v942 = vpop.f32.mrf.mxu0
        %943 = vdwg.mxu0
        %944 = vst.msk [vmem:[#allocation2] sm:$0xff] %vm767, %v939
        %s945 = scalar_lea.vmem %s1, 64
        %v946 = vld [vmem:[%s945] sm:$0xf]
        %v947 = vld [vmem:[%s945 + $0x4] sm:$0xf]
        %v948 = vld [vmem:[%s945 + $0x8] sm:$0xf]
        %v949 = vld [vmem:[%s945 + $0xc] sm:$0xf]
        %v950 = vld [vmem:[%s945 + $0x10] sm:$0xf]
        %v951 = vld [vmem:[%s945 + $0x14] sm:$0xf]
        %v952 = vld [vmem:[%s945 + $0x18] sm:$0xf]
        %v953 = vld [vmem:[%s945 + $0x1c] sm:$0xf]
        %v954 = vld [vmem:[%s945 + $0x20] sm:$0xf]
        %v955 = vld [vmem:[%s945 + $0x24] sm:$0xf]
        %v956 = vld [vmem:[%s945 + $0x28] sm:$0xf]
        %v957 = vld [vmem:[%s945 + $0x2c] sm:$0xf]
        %v958 = vld [vmem:[%s945 + $0x30] sm:$0xf]
        %v959 = vld [vmem:[%s945 + $0x34] sm:$0xf]
        %v960 = vld [vmem:[%s945 + $0x38] sm:$0xf]
        %v961 = vld [vmem:[%s945 + $0x3c] sm:$0xf]
        %963 = vrot.lane.b32.xlu0 %v710, 120
        %v964 = vpop.permute.xlu0 %963
        %v981 = vunpack.c.l.b16 %v946
        %v982 = vunpack.c.l.b16 %v947
        %v983 = vunpack.c.l.b16 %v948
        %v984 = vunpack.c.l.b16 %v949
        %v985 = vunpack.c.l.b16 %v950
        %v986 = vunpack.c.l.b16 %v951
        %v987 = vunpack.c.l.b16 %v952
        %v988 = vunpack.c.l.b16 %v953
        %v989 = vunpack.c.l.b16 %v954
        %v990 = vunpack.c.l.b16 %v955
        %v991 = vunpack.c.l.b16 %v956
        %v992 = vunpack.c.l.b16 %v957
        %v993 = vunpack.c.l.b16 %v958
        %v994 = vunpack.c.l.b16 %v959
        %v995 = vunpack.c.l.b16 %v960
        %v996 = vunpack.c.l.b16 %v961
        %v997 = vpack.c.b16 %v982, %v981
        %v998 = vpack.c.b16 %v984, %v983
        %v999 = vpack.c.b16 %v986, %v985
        %v1000 = vpack.c.b16 %v988, %v987
        %v1001 = vpack.c.b16 %v990, %v989
        %v1002 = vpack.c.b16 %v992, %v991
        %v1003 = vpack.c.b16 %v994, %v993
        %v1004 = vpack.c.b16 %v996, %v995
        %v1006 = vsel %vm767, %v964, 0
        %v1009 = vsel %vm767, %v997, 0
        %v1012 = vsel %vm767, %v998, 0
        %v1015 = vsel %vm767, %v999, 0
        %v1018 = vsel %vm767, %v1000, 0
        %v1021 = vsel %vm767, %v1001, 0
        %v1024 = vsel %vm767, %v1002, 0
        %v1027 = vsel %vm767, %v1003, 0
        %v1030 = vsel %vm767, %v1004, 0
        %1032 = vmatprep.subr.bf16.mxu0 0
        %1033 = vmatpush1.bf16.xpose.msra.mxu0 %v1030
        %1034 = vmatprep.subr.bf16.mxu0 0
        %1035 = vmatpush1.bf16.xpose.msra.mxu0 %v1027
        %1036 = vmatprep.subr.bf16.mxu0 0
        %1037 = vmatpush1.bf16.xpose.msra.mxu0 %v1024
        %1038 = vmatprep.subr.bf16.mxu0 0
        %1039 = vmatpush1.bf16.xpose.msra.mxu0 %v1021
        %1040 = vmatprep.subr.bf16.mxu0 0
        %1041 = vmatpush1.bf16.xpose.msra.mxu0 %v1018
        %1042 = vmatprep.subr.bf16.mxu0 0
        %1043 = vmatpush1.bf16.xpose.msra.mxu0 %v1015
        %1044 = vmatprep.subr.bf16.mxu0 0
        %1045 = vmatpush1.bf16.xpose.msra.mxu0 %v1012
        %1046 = vmatprep.subr.bf16.mxu0 0
        %1047 = vmatpush1.bf16.xpose.msra.mxu0 %v1009
        %1048 = vmatprep.subr.bf16.mxu0 0
        %1049 = vmatpush2.bf16.xpose.msra.mxu0 0
        %1050 = vmatprep.subr.bf16.mxu0 0
        %1051 = vmatpush2.bf16.xpose.msra.mxu0 0
        %1052 = vmatprep.subr.bf16.mxu0 0
        %1053 = vmatpush2.bf16.xpose.msra.mxu0 0
        %1054 = vmatprep.subr.bf16.mxu0 0
        %1055 = vmatpush2.bf16.xpose.msra.mxu0 0
        %1056 = vmatprep.subr.bf16.mxu0 0
        %1057 = vmatpush2.bf16.xpose.msra.mxu0 0
        %1058 = vmatprep.subr.bf16.mxu0 0
        %1059 = vmatpush2.bf16.xpose.msra.mxu0 0
        %1060 = vmatprep.subr.bf16.mxu0 0
        %1061 = vmatpush2.bf16.xpose.msra.mxu0 0
        %1062 = vmatprep.subr.bf16.mxu0 0
        %1063 = vmatpush2.bf16.xpose.msra.mxu0 0
        %1064 = vmatprep.mubr.bf16.mxu0 0
        %1065 = vmatmul.mubr.bf16.gmra.mxu0 %v1006
        %v1066 = vpop.f32.mrf.mxu0
        %v1067 = vadd.f32 0.0, %v1066
        %v1068 = vpop.f32.mrf.mxu0
        %v1069 = vpop.f32.mrf.mxu0
        %v1070 = vpop.f32.mrf.mxu0
        %1071 = vdwg.mxu0
        %s1073 = sor.u32 256, 121
        %1074 = vrot.lane.b32.xlu0 %v1067, %s1073
        %v1075 = vpop.permute.xlu0 %1074
        %1077 = vrot.lane.b32.xlu0 %v700, 120
        %v1078 = vpop.permute.xlu0 %1077
        %1080 = vrot.lane.b32.xlu0 %v626, 120
        %v1081 = vpop.permute.xlu0 %1080
        %v1083 = vsel %vm767, %v1078, 0
        %v1086 = vsel %vm767, %v1081, 0
        %1088 = vmatprep.subr.bf16.mxu0 0
        %1089 = vmatpush1.bf16.xpose.msra.mxu0 0
        %1090 = vmatprep.subr.bf16.mxu0 0
        %1091 = vmatpush1.bf16.xpose.msra.mxu0 0
        %1092 = vmatprep.subr.bf16.mxu0 0
        %1093 = vmatpush1.bf16.xpose.msra.mxu0 0
        %1094 = vmatprep.subr.bf16.mxu0 0
        %1095 = vmatpush1.bf16.xpose.msra.mxu0 0
        %1096 = vmatprep.subr.bf16.mxu0 0
        %1097 = vmatpush1.bf16.xpose.msra.mxu0 0
        %1098 = vmatprep.subr.bf16.mxu0 0
        %1099 = vmatpush1.bf16.xpose.msra.mxu0 0
        %1100 = vmatprep.subr.bf16.mxu0 0
        %1101 = vmatpush1.bf16.xpose.msra.mxu0 0
        %1102 = vmatprep.subr.bf16.mxu0 0
        %1103 = vmatpush1.bf16.xpose.msra.mxu0 %v1086
        %1104 = vmatprep.subr.bf16.mxu0 0
        %1105 = vmatpush2.bf16.xpose.msra.mxu0 0
        %1106 = vmatprep.subr.bf16.mxu0 0
        %1107 = vmatpush2.bf16.xpose.msra.mxu0 0
        %1108 = vmatprep.subr.bf16.mxu0 0
        %1109 = vmatpush2.bf16.xpose.msra.mxu0 0
        %1110 = vmatprep.subr.bf16.mxu0 0
        %1111 = vmatpush2.bf16.xpose.msra.mxu0 0
        %1112 = vmatprep.subr.bf16.mxu0 0
        %1113 = vmatpush2.bf16.xpose.msra.mxu0 0
        %1114 = vmatprep.subr.bf16.mxu0 0
        %1115 = vmatpush2.bf16.xpose.msra.mxu0 0
        %1116 = vmatprep.subr.bf16.mxu0 0
        %1117 = vmatpush2.bf16.xpose.msra.mxu0 0
        %1118 = vmatprep.subr.bf16.mxu0 0
        %1119 = vmatpush2.bf16.xpose.msra.mxu0 0
        %1120 = vmatprep.mubr.bf16.mxu0 0
        %1121 = vmatmul.mubr.bf16.gmra.mxu0 %v1083
        %v1122 = vpop.f32.mrf.mxu0
        %v1123 = vadd.f32 %v1075, %v1122
        %v1124 = vpop.f32.mrf.mxu0
        %v1125 = vpop.f32.mrf.mxu0
        %v1126 = vpop.f32.mrf.mxu0
        %1127 = vdwg.mxu0
        %v1128 = vsel %vm767, %v1123, -inf
        %1129 = vmax.xlane.f32.xlu0 %v1128
        %v1130 = vpop.xlane.xlu0 %1129
        %v1131 = vsub.f32 %v1123, %v1130
        %v1132 = vmul.f32 %v1131, 1.442695
        %v1133 = vpow.pop %v1132
        %v1134 = vsel %vm767, %v1133, 0.0
        %1135 = vadd.xlane.f32.xlu0 %v1134
        %v1136 = vpop.xlane.xlu0 %1135
        %v1137 = vrcp.pop %v1136
        %v1138 = vmul.f32 %v1133, %v1137
        %v1139 = vpack.c.bf16 %v1138, %v1138
        %1141 = vrot.lane.b32.xlu0 %v690, 120
        %v1142 = vpop.permute.xlu0 %1141
        %v1144 = vsel %vm767, %v1139, 0
        %v1147 = vsel %vm900, %v1142, 0
        %1149 = vmatprep.subr.bf16.mxu0 0
        %1150 = vmatpush1.bf16.msra.mxu0 0
        %1151 = vmatprep.subr.bf16.mxu0 0
        %1152 = vmatpush1.bf16.msra.mxu0 0
        %1153 = vmatprep.subr.bf16.mxu0 0
        %1154 = vmatpush1.bf16.msra.mxu0 0
        %1155 = vmatprep.subr.bf16.mxu0 0
        %1156 = vmatpush1.bf16.msra.mxu0 0
        %1157 = vmatprep.subr.bf16.mxu0 0
        %1158 = vmatpush1.bf16.msra.mxu0 0
        %1159 = vmatprep.subr.bf16.mxu0 0
        %1160 = vmatpush1.bf16.msra.mxu0 0
        %1161 = vmatprep.subr.bf16.mxu0 0
        %1162 = vmatpush1.bf16.msra.mxu0 0
        %1163 = vmatprep.subr.bf16.mxu0 0
        %1164 = vmatpush1.bf16.msra.mxu0 %v1147
        %1165 = vmatprep.subr.bf16.mxu0 0
        %1166 = vmatpush2.bf16.msra.mxu0 0
        %1167 = vmatprep.subr.bf16.mxu0 0
        %1168 = vmatpush2.bf16.msra.mxu0 0
        %1169 = vmatprep.subr.bf16.mxu0 0
        %1170 = vmatpush2.bf16.msra.mxu0 0
        %1171 = vmatprep.subr.bf16.mxu0 0
        %1172 = vmatpush2.bf16.msra.mxu0 0
        %1173 = vmatprep.subr.bf16.mxu0 0
        %1174 = vmatpush2.bf16.msra.mxu0 0
        %1175 = vmatprep.subr.bf16.mxu0 0
        %1176 = vmatpush2.bf16.msra.mxu0 0
        %1177 = vmatprep.subr.bf16.mxu0 0
        %1178 = vmatpush2.bf16.msra.mxu0 0
        %1179 = vmatprep.subr.bf16.mxu0 0
        %1180 = vmatpush2.bf16.msra.mxu0 0
        %1181 = vmatprep.mubr.bf16.mxu0 0
        %1182 = vmatmul.mubr.bf16.gmra.mxu0 %v1144
        %v1183 = vpop.f32.mrf.mxu0
        %v1184 = vadd.f32 0.0, %v1183
        %v1185 = vpop.f32.mrf.mxu0
        %v1186 = vpop.f32.mrf.mxu0
        %v1187 = vpop.f32.mrf.mxu0
        %1188 = vdwg.mxu0
        %1190 = vrot.lane.b32.xlu0 %v1184, 8
        %v1191 = vpop.permute.xlu0 %1190
        %vm1193 = vcmask 130112
        %1194 = vst.msk [vmem:[#allocation2] sm:$0xff] %vm1193, %v1191
        %s1195 = scalar_lea.vmem %s1, 128
        %v1196 = vld [vmem:[%s1195] sm:$0xf]
        %v1197 = vld [vmem:[%s1195 + $0x4] sm:$0xf]
        %v1198 = vld [vmem:[%s1195 + $0x8] sm:$0xf]
        %v1199 = vld [vmem:[%s1195 + $0xc] sm:$0xf]
        %v1200 = vld [vmem:[%s1195 + $0x10] sm:$0xf]
        %v1201 = vld [vmem:[%s1195 + $0x14] sm:$0xf]
        %v1202 = vld [vmem:[%s1195 + $0x18] sm:$0xf]
        %v1203 = vld [vmem:[%s1195 + $0x1c] sm:$0xf]
        %v1204 = vld [vmem:[%s1195 + $0x20] sm:$0xf]
        %v1205 = vld [vmem:[%s1195 + $0x24] sm:$0xf]
        %v1206 = vld [vmem:[%s1195 + $0x28] sm:$0xf]
        %v1207 = vld [vmem:[%s1195 + $0x2c] sm:$0xf]
        %v1208 = vld [vmem:[%s1195 + $0x30] sm:$0xf]
        %v1209 = vld [vmem:[%s1195 + $0x34] sm:$0xf]
        %v1210 = vld [vmem:[%s1195 + $0x38] sm:$0xf]
        %v1211 = vld [vmem:[%s1195 + $0x3c] sm:$0xf]
        %1212 = vrot.lane.b32.xlu0 %v710, 112
        %v1213 = vpop.permute.xlu0 %1212
        %v1230 = vunpack.c.l.b16 %v1196
        %v1231 = vunpack.c.l.b16 %v1197
        %v1232 = vunpack.c.l.b16 %v1198
        %v1233 = vunpack.c.l.b16 %v1199
        %v1234 = vunpack.c.l.b16 %v1200
        %v1235 = vunpack.c.l.b16 %v1201
        %v1236 = vunpack.c.l.b16 %v1202
        %v1237 = vunpack.c.l.b16 %v1203
        %v1238 = vunpack.c.l.b16 %v1204
        %v1239 = vunpack.c.l.b16 %v1205
        %v1240 = vunpack.c.l.b16 %v1206
        %v1241 = vunpack.c.l.b16 %v1207
        %v1242 = vunpack.c.l.b16 %v1208
        %v1243 = vunpack.c.l.b16 %v1209
        %v1244 = vunpack.c.l.b16 %v1210
        %v1245 = vunpack.c.l.b16 %v1211
        %v1246 = vpack.c.b16 %v1231, %v1230
        %v1247 = vpack.c.b16 %v1233, %v1232
        %v1248 = vpack.c.b16 %v1235, %v1234
        %v1249 = vpack.c.b16 %v1237, %v1236
        %v1250 = vpack.c.b16 %v1239, %v1238
        %v1251 = vpack.c.b16 %v1241, %v1240
        %v1252 = vpack.c.b16 %v1243, %v1242
        %v1253 = vpack.c.b16 %v1245, %v1244
        %v1255 = vsel %vm767, %v1213, 0
        %v1258 = vsel %vm767, %v1246, 0
        %v1261 = vsel %vm767, %v1247, 0
        %v1264 = vsel %vm767, %v1248, 0
        %v1267 = vsel %vm767, %v1249, 0
        %v1270 = vsel %vm767, %v1250, 0
        %v1273 = vsel %vm767, %v1251, 0
        %v1276 = vsel %vm767, %v1252, 0
        %v1279 = vsel %vm767, %v1253, 0
        %1281 = vmatprep.subr.bf16.mxu0 0
        %1282 = vmatpush1.bf16.xpose.msra.mxu0 %v1279
        %1283 = vmatprep.subr.bf16.mxu0 0
        %1284 = vmatpush1.bf16.xpose.msra.mxu0 %v1276
        %1285 = vmatprep.subr.bf16.mxu0 0
        %1286 = vmatpush1.bf16.xpose.msra.mxu0 %v1273
        %1287 = vmatprep.subr.bf16.mxu0 0
        %1288 = vmatpush1.bf16.xpose.msra.mxu0 %v1270
        %1289 = vmatprep.subr.bf16.mxu0 0
        %1290 = vmatpush1.bf16.xpose.msra.mxu0 %v1267
        %1291 = vmatprep.subr.bf16.mxu0 0
        %1292 = vmatpush1.bf16.xpose.msra.mxu0 %v1264
        %1293 = vmatprep.subr.bf16.mxu0 0
        %1294 = vmatpush1.bf16.xpose.msra.mxu0 %v1261
        %1295 = vmatprep.subr.bf16.mxu0 0
        %1296 = vmatpush1.bf16.xpose.msra.mxu0 %v1258
        %1297 = vmatprep.subr.bf16.mxu0 0
        %1298 = vmatpush2.bf16.xpose.msra.mxu0 0
        %1299 = vmatprep.subr.bf16.mxu0 0
        %1300 = vmatpush2.bf16.xpose.msra.mxu0 0
        %1301 = vmatprep.subr.bf16.mxu0 0
        %1302 = vmatpush2.bf16.xpose.msra.mxu0 0
        %1303 = vmatprep.subr.bf16.mxu0 0
        %1304 = vmatpush2.bf16.xpose.msra.mxu0 0
        %1305 = vmatprep.subr.bf16.mxu0 0
        %1306 = vmatpush2.bf16.xpose.msra.mxu0 0
        %1307 = vmatprep.subr.bf16.mxu0 0
        %1308 = vmatpush2.bf16.xpose.msra.mxu0 0
        %1309 = vmatprep.subr.bf16.mxu0 0
        %1310 = vmatpush2.bf16.xpose.msra.mxu0 0
        %1311 = vmatprep.subr.bf16.mxu0 0
        %1312 = vmatpush2.bf16.xpose.msra.mxu0 0
        %1313 = vmatprep.mubr.bf16.mxu0 0
        %1314 = vmatmul.mubr.bf16.gmra.mxu0 %v1255
        %v1315 = vpop.f32.mrf.mxu0
        %v1316 = vadd.f32 0.0, %v1315
        %v1317 = vpop.f32.mrf.mxu0
        %v1318 = vpop.f32.mrf.mxu0
        %v1319 = vpop.f32.mrf.mxu0
        %1320 = vdwg.mxu0
        %s1322 = sor.u32 256, 121
        %1323 = vrot.lane.b32.xlu0 %v1316, %s1322
        %v1324 = vpop.permute.xlu0 %1323
        %1325 = vrot.lane.b32.xlu0 %v700, 112
        %v1326 = vpop.permute.xlu0 %1325
        %1327 = vrot.lane.b32.xlu0 %v626, 112
        %v1328 = vpop.permute.xlu0 %1327
        %v1330 = vsel %vm767, %v1326, 0
        %v1333 = vsel %vm767, %v1328, 0
        %1335 = vmatprep.subr.bf16.mxu0 0
        %1336 = vmatpush1.bf16.xpose.msra.mxu0 0
        %1337 = vmatprep.subr.bf16.mxu0 0
        %1338 = vmatpush1.bf16.xpose.msra.mxu0 0
        %1339 = vmatprep.subr.bf16.mxu0 0
        %1340 = vmatpush1.bf16.xpose.msra.mxu0 0
        %1341 = vmatprep.subr.bf16.mxu0 0
        %1342 = vmatpush1.bf16.xpose.msra.mxu0 0
        %1343 = vmatprep.subr.bf16.mxu0 0
        %1344 = vmatpush1.bf16.xpose.msra.mxu0 0
        %1345 = vmatprep.subr.bf16.mxu0 0
        %1346 = vmatpush1.bf16.xpose.msra.mxu0 0
        %1347 = vmatprep.subr.bf16.mxu0 0
        %1348 = vmatpush1.bf16.xpose.msra.mxu0 0
        %1349 = vmatprep.subr.bf16.mxu0 0
        %1350 = vmatpush1.bf16.xpose.msra.mxu0 %v1333
        %1351 = vmatprep.subr.bf16.mxu0 0
        %1352 = vmatpush2.bf16.xpose.msra.mxu0 0
        %1353 = vmatprep.subr.bf16.mxu0 0
        %1354 = vmatpush2.bf16.xpose.msra.mxu0 0
        %1355 = vmatprep.subr.bf16.mxu0 0
        %1356 = vmatpush2.bf16.xpose.msra.mxu0 0
        %1357 = vmatprep.subr.bf16.mxu0 0
        %1358 = vmatpush2.bf16.xpose.msra.mxu0 0
        %1359 = vmatprep.subr.bf16.mxu0 0
        %1360 = vmatpush2.bf16.xpose.msra.mxu0 0
        %1361 = vmatprep.subr.bf16.mxu0 0
        %1362 = vmatpush2.bf16.xpose.msra.mxu0 0
        %1363 = vmatprep.subr.bf16.mxu0 0
        %1364 = vmatpush2.bf16.xpose.msra.mxu0 0
        %1365 = vmatprep.subr.bf16.mxu0 0
        %1366 = vmatpush2.bf16.xpose.msra.mxu0 0
        %1367 = vmatprep.mubr.bf16.mxu0 0
        %1368 = vmatmul.mubr.bf16.gmra.mxu0 %v1330
        %v1369 = vpop.f32.mrf.mxu0
        %v1370 = vadd.f32 %v1324, %v1369
        %v1371 = vpop.f32.mrf.mxu0
        %v1372 = vpop.f32.mrf.mxu0
        %v1373 = vpop.f32.mrf.mxu0
        %1374 = vdwg.mxu0
        %v1375 = vsel %vm767, %v1370, -inf
        %1376 = vmax.xlane.f32.xlu0 %v1375
        %v1377 = vpop.xlane.xlu0 %1376
        %v1378 = vsub.f32 %v1370, %v1377
        %v1379 = vmul.f32 %v1378, 1.442695
        %v1380 = vpow.pop %v1379
        %v1381 = vsel %vm767, %v1380, 0.0
        %1382 = vadd.xlane.f32.xlu0 %v1381
        %v1383 = vpop.xlane.xlu0 %1382
        %v1384 = vrcp.pop %v1383
        %v1385 = vmul.f32 %v1380, %v1384
        %v1386 = vpack.c.bf16 %v1385, %v1385
        %1387 = vrot.lane.b32.xlu0 %v690, 112
        %v1388 = vpop.permute.xlu0 %1387
        %v1390 = vsel %vm767, %v1386, 0
        %v1393 = vsel %vm900, %v1388, 0
        %1395 = vmatprep.subr.bf16.mxu0 0
        %1396 = vmatpush1.bf16.msra.mxu0 0
        %1397 = vmatprep.subr.bf16.mxu0 0
        %1398 = vmatpush1.bf16.msra.mxu0 0
        %1399 = vmatprep.subr.bf16.mxu0 0
        %1400 = vmatpush1.bf16.msra.mxu0 0
        %1401 = vmatprep.subr.bf16.mxu0 0
        %1402 = vmatpush1.bf16.msra.mxu0 0
        %1403 = vmatprep.subr.bf16.mxu0 0
        %1404 = vmatpush1.bf16.msra.mxu0 0
        %1405 = vmatprep.subr.bf16.mxu0 0
        %1406 = vmatpush1.bf16.msra.mxu0 0
        %1407 = vmatprep.subr.bf16.mxu0 0
        %1408 = vmatpush1.bf16.msra.mxu0 0
        %1409 = vmatprep.subr.bf16.mxu0 0
        %1410 = vmatpush1.bf16.msra.mxu0 %v1393
        %1411 = vmatprep.subr.bf16.mxu0 0
        %1412 = vmatpush2.bf16.msra.mxu0 0
        %1413 = vmatprep.subr.bf16.mxu0 0
        %1414 = vmatpush2.bf16.msra.mxu0 0
        %1415 = vmatprep.subr.bf16.mxu0 0
        %1416 = vmatpush2.bf16.msra.mxu0 0
        %1417 = vmatprep.subr.bf16.mxu0 0
        %1418 = vmatpush2.bf16.msra.mxu0 0
        %1419 = vmatprep.subr.bf16.mxu0 0
        %1420 = vmatpush2.bf16.msra.mxu0 0
        %1421 = vmatprep.subr.bf16.mxu0 0
        %1422 = vmatpush2.bf16.msra.mxu0 0
        %1423 = vmatprep.subr.bf16.mxu0 0
        %1424 = vmatpush2.bf16.msra.mxu0 0
        %1425 = vmatprep.subr.bf16.mxu0 0
        %1426 = vmatpush2.bf16.msra.mxu0 0
        %1427 = vmatprep.mubr.bf16.mxu0 0
        %1428 = vmatmul.mubr.bf16.gmra.mxu0 %v1390
        %v1429 = vpop.f32.mrf.mxu0
        %v1430 = vadd.f32 0.0, %v1429
        %v1431 = vpop.f32.mrf.mxu0
        %v1432 = vpop.f32.mrf.mxu0
        %v1433 = vpop.f32.mrf.mxu0
        %1434 = vdwg.mxu0
        %1436 = vrot.lane.b32.xlu0 %v1430, 16
        %v1437 = vpop.permute.xlu0 %1436
        %vm1439 = vcmask 195712
        %1440 = vst.msk [vmem:[#allocation2] sm:$0xff] %vm1439, %v1437
        %s1441 = scalar_lea.vmem %s1, 192
        %v1442 = vld [vmem:[%s1441] sm:$0xf]
        %v1443 = vld [vmem:[%s1441 + $0x4] sm:$0xf]
        %v1444 = vld [vmem:[%s1441 + $0x8] sm:$0xf]
        %v1445 = vld [vmem:[%s1441 + $0xc] sm:$0xf]
        %v1446 = vld [vmem:[%s1441 + $0x10] sm:$0xf]
        %v1447 = vld [vmem:[%s1441 + $0x14] sm:$0xf]
        %v1448 = vld [vmem:[%s1441 + $0x18] sm:$0xf]
        %v1449 = vld [vmem:[%s1441 + $0x1c] sm:$0xf]
        %v1450 = vld [vmem:[%s1441 + $0x20] sm:$0xf]
        %v1451 = vld [vmem:[%s1441 + $0x24] sm:$0xf]
        %v1452 = vld [vmem:[%s1441 + $0x28] sm:$0xf]
        %v1453 = vld [vmem:[%s1441 + $0x2c] sm:$0xf]
        %v1454 = vld [vmem:[%s1441 + $0x30] sm:$0xf]
        %v1455 = vld [vmem:[%s1441 + $0x34] sm:$0xf]
        %v1456 = vld [vmem:[%s1441 + $0x38] sm:$0xf]
        %v1457 = vld [vmem:[%s1441 + $0x3c] sm:$0xf]
        %1458 = vrot.lane.b32.xlu0 %v710, 104
        %v1459 = vpop.permute.xlu0 %1458
        %v1476 = vunpack.c.l.b16 %v1442
        %v1477 = vunpack.c.l.b16 %v1443
        %v1478 = vunpack.c.l.b16 %v1444
        %v1479 = vunpack.c.l.b16 %v1445
        %v1480 = vunpack.c.l.b16 %v1446
        %v1481 = vunpack.c.l.b16 %v1447
        %v1482 = vunpack.c.l.b16 %v1448
        %v1483 = vunpack.c.l.b16 %v1449
        %v1484 = vunpack.c.l.b16 %v1450
        %v1485 = vunpack.c.l.b16 %v1451
        %v1486 = vunpack.c.l.b16 %v1452
        %v1487 = vunpack.c.l.b16 %v1453
        %v1488 = vunpack.c.l.b16 %v1454
        %v1489 = vunpack.c.l.b16 %v1455
        %v1490 = vunpack.c.l.b16 %v1456
        %v1491 = vunpack.c.l.b16 %v1457
        %v1492 = vpack.c.b16 %v1477, %v1476
        %v1493 = vpack.c.b16 %v1479, %v1478
        %v1494 = vpack.c.b16 %v1481, %v1480
        %v1495 = vpack.c.b16 %v1483, %v1482
        %v1496 = vpack.c.b16 %v1485, %v1484
        %v1497 = vpack.c.b16 %v1487, %v1486
        %v1498 = vpack.c.b16 %v1489, %v1488
        %v1499 = vpack.c.b16 %v1491, %v1490
        %v1501 = vsel %vm767, %v1459, 0
        %v1504 = vsel %vm767, %v1492, 0
        %v1507 = vsel %vm767, %v1493, 0
        %v1510 = vsel %vm767, %v1494, 0
        %v1513 = vsel %vm767, %v1495, 0
        %v1516 = vsel %vm767, %v1496, 0
        %v1519 = vsel %vm767, %v1497, 0
        %v1522 = vsel %vm767, %v1498, 0
        %v1525 = vsel %vm767, %v1499, 0
        %1527 = vmatprep.subr.bf16.mxu0 0
        %1528 = vmatpush1.bf16.xpose.msra.mxu0 %v1525
        %1529 = vmatprep.subr.bf16.mxu0 0
        %1530 = vmatpush1.bf16.xpose.msra.mxu0 %v1522
        %1531 = vmatprep.subr.bf16.mxu0 0
        %1532 = vmatpush1.bf16.xpose.msra.mxu0 %v1519
        %1533 = vmatprep.subr.bf16.mxu0 0
        %1534 = vmatpush1.bf16.xpose.msra.mxu0 %v1516
        %1535 = vmatprep.subr.bf16.mxu0 0
        %1536 = vmatpush1.bf16.xpose.msra.mxu0 %v1513
        %1537 = vmatprep.subr.bf16.mxu0 0
        %1538 = vmatpush1.bf16.xpose.msra.mxu0 %v1510
        %1539 = vmatprep.subr.bf16.mxu0 0
        %1540 = vmatpush1.bf16.xpose.msra.mxu0 %v1507
        %1541 = vmatprep.subr.bf16.mxu0 0
        %1542 = vmatpush1.bf16.xpose.msra.mxu0 %v1504
        %1543 = vmatprep.subr.bf16.mxu0 0
        %1544 = vmatpush2.bf16.xpose.msra.mxu0 0
        %1545 = vmatprep.subr.bf16.mxu0 0
        %1546 = vmatpush2.bf16.xpose.msra.mxu0 0
        %1547 = vmatprep.subr.bf16.mxu0 0
        %1548 = vmatpush2.bf16.xpose.msra.mxu0 0
        %1549 = vmatprep.subr.bf16.mxu0 0
        %1550 = vmatpush2.bf16.xpose.msra.mxu0 0
        %1551 = vmatprep.subr.bf16.mxu0 0
        %1552 = vmatpush2.bf16.xpose.msra.mxu0 0
        %1553 = vmatprep.subr.bf16.mxu0 0
        %1554 = vmatpush2.bf16.xpose.msra.mxu0 0
        %1555 = vmatprep.subr.bf16.mxu0 0
        %1556 = vmatpush2.bf16.xpose.msra.mxu0 0
        %1557 = vmatprep.subr.bf16.mxu0 0
        %1558 = vmatpush2.bf16.xpose.msra.mxu0 0
        %1559 = vmatprep.mubr.bf16.mxu0 0
        %1560 = vmatmul.mubr.bf16.gmra.mxu0 %v1501
        %v1561 = vpop.f32.mrf.mxu0
        %v1562 = vadd.f32 0.0, %v1561
        %v1563 = vpop.f32.mrf.mxu0
        %v1564 = vpop.f32.mrf.mxu0
        %v1565 = vpop.f32.mrf.mxu0
        %1566 = vdwg.mxu0
        %s1568 = sor.u32 256, 121
        %1569 = vrot.lane.b32.xlu0 %v1562, %s1568
        %v1570 = vpop.permute.xlu0 %1569
        %1571 = vrot.lane.b32.xlu0 %v700, 104
        %v1572 = vpop.permute.xlu0 %1571
        %1573 = vrot.lane.b32.xlu0 %v626, 104
        %v1574 = vpop.permute.xlu0 %1573
        %v1576 = vsel %vm767, %v1572, 0
        %v1579 = vsel %vm767, %v1574, 0
        %1581 = vmatprep.subr.bf16.mxu0 0
        %1582 = vmatpush1.bf16.xpose.msra.mxu0 0
        %1583 = vmatprep.subr.bf16.mxu0 0
        %1584 = vmatpush1.bf16.xpose.msra.mxu0 0
        %1585 = vmatprep.subr.bf16.mxu0 0
        %1586 = vmatpush1.bf16.xpose.msra.mxu0 0
        %1587 = vmatprep.subr.bf16.mxu0 0
        %1588 = vmatpush1.bf16.xpose.msra.mxu0 0
        %1589 = vmatprep.subr.bf16.mxu0 0
        %1590 = vmatpush1.bf16.xpose.msra.mxu0 0
        %1591 = vmatprep.subr.bf16.mxu0 0
        %1592 = vmatpush1.bf16.xpose.msra.mxu0 0
        %1593 = vmatprep.subr.bf16.mxu0 0
        %1594 = vmatpush1.bf16.xpose.msra.mxu0 0
        %1595 = vmatprep.subr.bf16.mxu0 0
        %1596 = vmatpush1.bf16.xpose.msra.mxu0 %v1579
        %1597 = vmatprep.subr.bf16.mxu0 0
        %1598 = vmatpush2.bf16.xpose.msra.mxu0 0
        %1599 = vmatprep.subr.bf16.mxu0 0
        %1600 = vmatpush2.bf16.xpose.msra.mxu0 0
        %1601 = vmatprep.subr.bf16.mxu0 0
        %1602 = vmatpush2.bf16.xpose.msra.mxu0 0
        %1603 = vmatprep.subr.bf16.mxu0 0
        %1604 = vmatpush2.bf16.xpose.msra.mxu0 0
        %1605 = vmatprep.subr.bf16.mxu0 0
        %1606 = vmatpush2.bf16.xpose.msra.mxu0 0
        %1607 = vmatprep.subr.bf16.mxu0 0
        %1608 = vmatpush2.bf16.xpose.msra.mxu0 0
        %1609 = vmatprep.subr.bf16.mxu0 0
        %1610 = vmatpush2.bf16.xpose.msra.mxu0 0
        %1611 = vmatprep.subr.bf16.mxu0 0
        %1612 = vmatpush2.bf16.xpose.msra.mxu0 0
        %1613 = vmatprep.mubr.bf16.mxu0 0
        %1614 = vmatmul.mubr.bf16.gmra.mxu0 %v1576
        %v1615 = vpop.f32.mrf.mxu0
        %v1616 = vadd.f32 %v1570, %v1615
        %v1617 = vpop.f32.mrf.mxu0
        %v1618 = vpop.f32.mrf.mxu0
        %v1619 = vpop.f32.mrf.mxu0
        %1620 = vdwg.mxu0
        %v1621 = vsel %vm767, %v1616, -inf
        %1622 = vmax.xlane.f32.xlu0 %v1621
        %v1623 = vpop.xlane.xlu0 %1622
        %v1624 = vsub.f32 %v1616, %v1623
        %v1625 = vmul.f32 %v1624, 1.442695
        %v1626 = vpow.pop %v1625
        %v1627 = vsel %vm767, %v1626, 0.0
        %1628 = vadd.xlane.f32.xlu0 %v1627
        %v1629 = vpop.xlane.xlu0 %1628
        %v1630 = vrcp.pop %v1629
        %v1631 = vmul.f32 %v1626, %v1630
        %v1632 = vpack.c.bf16 %v1631, %v1631
        %1633 = vrot.lane.b32.xlu0 %v690, 104
        %v1634 = vpop.permute.xlu0 %1633
        %v1636 = vsel %vm767, %v1632, 0
        %v1639 = vsel %vm900, %v1634, 0
        %1641 = vmatprep.subr.bf16.mxu0 0
        %1642 = vmatpush1.bf16.msra.mxu0 0
        %1643 = vmatprep.subr.bf16.mxu0 0
        %1644 = vmatpush1.bf16.msra.mxu0 0
        %1645 = vmatprep.subr.bf16.mxu0 0
        %1646 = vmatpush1.bf16.msra.mxu0 0
        %1647 = vmatprep.subr.bf16.mxu0 0
        %1648 = vmatpush1.bf16.msra.mxu0 0
        %1649 = vmatprep.subr.bf16.mxu0 0
        %1650 = vmatpush1.bf16.msra.mxu0 0
        %1651 = vmatprep.subr.bf16.mxu0 0
        %1652 = vmatpush1.bf16.msra.mxu0 0
        %1653 = vmatprep.subr.bf16.mxu0 0
        %1654 = vmatpush1.bf16.msra.mxu0 0
        %1655 = vmatprep.subr.bf16.mxu0 0
        %1656 = vmatpush1.bf16.msra.mxu0 %v1639
        %1657 = vmatprep.subr.bf16.mxu0 0
        %1658 = vmatpush2.bf16.msra.mxu0 0
        %1659 = vmatprep.subr.bf16.mxu0 0
        %1660 = vmatpush2.bf16.msra.mxu0 0
        %1661 = vmatprep.subr.bf16.mxu0 0
        %1662 = vmatpush2.bf16.msra.mxu0 0
        %1663 = vmatprep.subr.bf16.mxu0 0
        %1664 = vmatpush2.bf16.msra.mxu0 0
        %1665 = vmatprep.subr.bf16.mxu0 0
        %1666 = vmatpush2.bf16.msra.mxu0 0
        %1667 = vmatprep.subr.bf16.mxu0 0
        %1668 = vmatpush2.bf16.msra.mxu0 0
        %1669 = vmatprep.subr.bf16.mxu0 0
        %1670 = vmatpush2.bf16.msra.mxu0 0
        %1671 = vmatprep.subr.bf16.mxu0 0
        %1672 = vmatpush2.bf16.msra.mxu0 0
        %1673 = vmatprep.mubr.bf16.mxu0 0
        %1674 = vmatmul.mubr.bf16.gmra.mxu0 %v1636
        %v1675 = vpop.f32.mrf.mxu0
        %v1676 = vadd.f32 0.0, %v1675
        %v1677 = vpop.f32.mrf.mxu0
        %v1678 = vpop.f32.mrf.mxu0
        %v1679 = vpop.f32.mrf.mxu0
        %1680 = vdwg.mxu0
        %1682 = vrot.lane.b32.xlu0 %v1676, 24
        %v1683 = vpop.permute.xlu0 %1682
        %vm1685 = vcmask 261312
        %1686 = vst.msk [vmem:[#allocation2] sm:$0xff] %vm1685, %v1683
        %v1687 = vld [vmem:[#allocation2] sm:$0xff]
        %v1688 = vpack.c.bf16 %v1687, %v1687
        %v1689 = vld [vmem:[%s12] sm:$0xf]
        %v1690 = vld [vmem:[%s12 + $0x4] sm:$0xf]
        %v1691 = vld [vmem:[%s12 + $0x8] sm:$0xf]
        %v1692 = vld [vmem:[%s12 + $0xc] sm:$0xf]
        %v1693 = vld [vmem:[%s13] sm:$0x1]
        %v1695 = vlaneseq
        %v1696 = vshrl.u32 %v1695, 7
        %v1697 = vsub.s32 0, %v1696
        %v1698 = vrot.slane %v1693, %v1697
        %v1704 = vunpack.c.l.b16 %v1689
        %v1705 = vunpack.c.l.b16 %v1690
        %v1706 = vunpack.c.l.b16 %v1691
        %v1707 = vunpack.c.l.b16 %v1692
        %v1708 = vpack.c.b16 %v1705, %v1704
        %v1709 = vpack.c.b16 %v1707, %v1706
        %v1713 = vsel %vm465, %v1688, 0
        %1715 = vmatprep.subr.bf16.mxu0 0
        %1716 = vmatpush1.bf16.msra.mxu0 0
        %1717 = vmatprep.subr.bf16.mxu0 0
        %1718 = vmatpush1.bf16.msra.mxu0 0
        %1719 = vmatprep.subr.bf16.mxu0 0
        %1720 = vmatpush1.bf16.msra.mxu0 0
        %1721 = vmatprep.subr.bf16.mxu0 0
        %1722 = vmatpush1.bf16.msra.mxu0 0
        %1723 = vmatprep.subr.bf16.mxu0 0
        %1724 = vmatpush1.bf16.msra.mxu0 0
        %1725 = vmatprep.subr.bf16.mxu0 0
        %1726 = vmatpush1.bf16.msra.mxu0 0
        %1727 = vmatprep.subr.bf16.mxu0 0
        %1728 = vmatpush1.bf16.msra.mxu0 %v1709
        %1729 = vmatprep.subr.bf16.mxu0 0
        %1730 = vmatpush1.bf16.msra.mxu0 %v1708
        %1731 = vmatprep.subr.bf16.mxu0 0
        %1732 = vmatpush2.bf16.msra.mxu0 0
        %1733 = vmatprep.subr.bf16.mxu0 0
        %1734 = vmatpush2.bf16.msra.mxu0 0
        %1735 = vmatprep.subr.bf16.mxu0 0
        %1736 = vmatpush2.bf16.msra.mxu0 0
        %1737 = vmatprep.subr.bf16.mxu0 0
        %1738 = vmatpush2.bf16.msra.mxu0 0
        %1739 = vmatprep.subr.bf16.mxu0 0
        %1740 = vmatpush2.bf16.msra.mxu0 0
        %1741 = vmatprep.subr.bf16.mxu0 0
        %1742 = vmatpush2.bf16.msra.mxu0 0
        %1743 = vmatprep.subr.bf16.mxu0 0
        %1744 = vmatpush2.bf16.msra.mxu0 0
        %1745 = vmatprep.subr.bf16.mxu0 0
        %1746 = vmatpush2.bf16.msra.mxu0 0
        %1747 = vmatprep.mubr.bf16.mxu0 0
        %1748 = vmatmul.mubr.bf16.gmra.mxu0 %v1713
        %v1749 = vpop.f32.mrf.mxu0
        %v1750 = vadd.f32 %v1698, %v1749
        %v1751 = vpop.f32.mrf.mxu0
        %v1752 = vpop.f32.mrf.mxu0
        %v1753 = vpop.f32.mrf.mxu0
        %1754 = vdwg.mxu0
        %1755 = vst.msk [vmem:[%s458] sm:$0xff] %vm465, %v1750
        %s1756 = sand.u32 %s335, 1
        %s1757 = scalar_lea.sflag [#allocation4], %s1756
        %s1758 = sand.u32 %s335, 1
        %s1759 = smul.addr %s1758, 8
        %s1760 = scalar_lea.vmem [#allocation3], %s1759
        // Predicated region
        $region77: #{tpu_custom_call.1} parent=75 // pred_check
          %p1761 = pneg %p345
        $region78: #{tpu_custom_call.1} parent=75 // pred_check_branch
          %1763 = sbr.rel (%p1761) target = $region80
        $region79: #{tpu_custom_call.1} parent=75 // pred_region
          %s1765 = ssub.s32 128, 128
          %1766 = vsyncadd %s1757, %s1765
          %s1767 = smul.addr %s28, 128
          %s1768 = scalar_lea.hbm %s14, %s1767
          %s1770 = sshll.u32 %s1760, 4
          %s1771 = int_to_ptr.vmem [resolvable:$true] %s1770
          %1773 = dma.vmem_to_hbm [thread:$0]  %s1771, 128, %s1768, %s1757
        $region80: #{tpu_custom_call.1} parent=75 // pred_fallthru
          _
      $region76: #{tpu_custom_call.1} parent=5 // pred_fallthru
        _
      %p1774 = scmp.le.s32.totalorder 2, %s23
      // Predicated region
      $region81: #{tpu_custom_call.1} parent=5 // pred_check
        %p1775 = pneg %p1774
      $region82: #{tpu_custom_call.1} parent=5 // pred_check_branch
        %1777 = sbr.rel (%p1775) target = $region84
      $region83: #{tpu_custom_call.1} parent=5 // pred_region
        %s1778 = ssub.s32 %s23, 2
        // Predicated region
        $region85: #{tpu_custom_call.1} parent=83 // pred_check
          %p1779 = pneg %p351
        $region86: #{tpu_custom_call.1} parent=83 // pred_check_branch
          %1781 = sbr.rel (%p1779) target = $region88
        $region87: #{tpu_custom_call.1} parent=83 // pred_region
          %s1782 = sand.u32 %s336, 1
          %s1783 = scalar_lea.sflag [#allocation4], %s1782
          %s1784 = sand.u32 %s336, 1
          %s1785 = smul.addr %s1784, 8
          %s1786 = scalar_lea.vmem [#allocation3], %s1785
          %1787 = dma.done %s1783, 128
        $region88: #{tpu_custom_call.1} parent=83 // pred_fallthru
          _
      $region84: #{tpu_custom_call.1} parent=5 // pred_fallthru
        _
    $region6: #{tpu_custom_call.1} parent=1 // loop_footer
      %s27 = sadd.s32 1, %s23
    $region7: #{tpu_custom_call.1} parent=1 // loop_footer_branch
      %22 = sbr.rel target = $region3
    $region8: #{tpu_custom_call.1} parent=1 // loop_exit
      _
    %1788 = vsyncpa [#allocation4], 1
    %s1789 = scalar_lea.sflag [#allocation4], 1
    %1790 = vsyncpa %s1789, 1

</llo_original>
